<compile_context>
chip_gen: v7x
topology: tpu7x:2x2x1
jax: 0.10.0
libtpu: 0.0.40
codegen_flags: <defaults>
</compile_context>

<pallas_src>
import functools
import math

import jax
import jax.numpy as jnp
from jax import lax
from jax.experimental import pallas as pl
from jax.experimental.pallas import tpu as pltpu


def _round_up(x, m):
    return ((x + m - 1) // m) * m


def _vmem_limit(need_bytes):
    # Explicit scoped-VMEM budget: generous headroom over the estimated
    # working set, floored at 32 MiB, capped at 48 MiB so there is always
    # slack for Mosaic internal scratch even on v7x (64 MiB physical VMEM).
    return int(min(max(4 * need_bytes, 32 * 1024 * 1024), 48 * 1024 * 1024))


# ---------------------------------------------------------------------------
# Kernel 1: Q/K/V projection.
#   x (1, tc, D) tile  @  resident Wq/Wk/Wv (D, H)  ->  stacked (3, 1, tc, H)
# The (3, B, Cp, H) output layout lets the attention kernel consume q/k/v via
# its BlockSpec index maps with zero intermediate XLA slices/reshapes.
# ---------------------------------------------------------------------------
def _qkv_proj_kernel(x_ref, wq_ref, wk_ref, wv_ref, o_ref):
    x = x_ref[0]                                   # (tc, D)
    o_ref[0, 0] = jnp.dot(x, wq_ref[...],
                          preferred_element_type=jnp.float32).astype(o_ref.dtype)
    o_ref[1, 0] = jnp.dot(x, wk_ref[...],
                          preferred_element_type=jnp.float32).astype(o_ref.dtype)
    o_ref[2, 0] = jnp.dot(x, wv_ref[...],
                          preferred_element_type=jnp.float32).astype(o_ref.dtype)


def _qkv_projection(x, wq, wk, wv, *, tc, out_dtype):
    """x: (B, Cp, D), w*: (D, H)  ->  qkv: (3, B, Cp, H) in out_dtype."""
    B, Cp, D = x.shape
    H = wq.shape[1]
    grid = (B, Cp // tc)

    in_item = x.dtype.itemsize
    out_item = jnp.dtype(out_dtype).itemsize
    flops = 2 * B * Cp * D * 3 * H
    bytes_accessed = (B * Cp * D + 3 * D * H) * in_item + 3 * B * Cp * H * out_item
    need = (2 * tc * D + 2 * 3 * D * H) * in_item \
        + 2 * 3 * tc * H * out_item + 3 * tc * H * 4

    return pl.pallas_call(
        _qkv_proj_kernel,
        out_shape=jax.ShapeDtypeStruct((3, B, Cp, H), out_dtype),
        grid_spec=pltpu.PrefetchScalarGridSpec(
            num_scalar_prefetch=0,
            grid=grid,
            in_specs=[
                pl.BlockSpec((1, tc, D), lambda b, i: (b, i, 0)),   # x tile
                pl.BlockSpec((D, H), lambda b, i: (0, 0)),          # Wq (resident)
                pl.BlockSpec((D, H), lambda b, i: (0, 0)),          # Wk (resident)
                pl.BlockSpec((D, H), lambda b, i: (0, 0)),          # Wv (resident)
            ],
            out_specs=pl.BlockSpec((3, 1, tc, H), lambda b, i: (0, b, i, 0)),
        ),
        compiler_params=pltpu.CompilerParams(
            dimension_semantics=("parallel", "parallel"),
            vmem_limit_bytes=_vmem_limit(need),
        ),
        cost_estimate=pl.CostEstimate(
            flops=int(flops), transcendentals=0,
            bytes_accessed=int(bytes_accessed)),
    )(x, wq, wk, wv)


# ---------------------------------------------------------------------------
# Kernel 2: causal single-head attention with online (flash) softmax.
# ---------------------------------------------------------------------------
def _attn_kernel(q_ref, k_ref, v_ref, o_ref, m_sc, l_sc, acc_sc,
                 *, t, seq_len, padded_len, scale):
    qi = pl.program_id(1)
    ki = pl.program_id(2)

    @pl.when(ki == 0)
    def _init():
        m_sc[...] = jnp.full(m_sc.shape, -jnp.inf, dtype=jnp.float32)
        l_sc[...] = jnp.zeros(l_sc.shape, dtype=jnp.float32)
        acc_sc[...] = jnp.zeros(acc_sc.shape, dtype=jnp.float32)

    def scores():
        # (t, H) x (t, H) contracted over H -> (t, t), f32 accumulation.
        return scale * lax.dot_general(
            q_ref[0, 0], k_ref[0, 0], (((1,), (1,)), ((), ())),
            preferred_element_type=jnp.float32)

    def online_update(s):
        m_prev = m_sc[...]
        m_new = jnp.maximum(m_prev, s.max(axis=-1, keepdims=True))
        alpha = jnp.exp(m_prev - m_new)
        p = jnp.exp(s - m_new)
        l_sc[...] = alpha * l_sc[...] + p.sum(axis=-1, keepdims=True)
        acc_sc[...] = alpha * acc_sc[...] + jnp.dot(
            p.astype(v_ref.dtype), v_ref[0, 0],
            preferred_element_type=jnp.float32)
        m_sc[...] = m_new

    # Interior causal blocks: strictly below the diagonal -> no mask at all.
    @pl.when(ki < qi)
    def _interior():
        online_update(scores())

    # Diagonal block: causal mask (+ sequence-padding mask only if padded),
    # then finalize.  All ki > qi steps are fully masked: their compute is
    # skipped and their clamped K/V index maps issue no new DMA.
    @pl.when(ki == qi)
    def _diagonal():
        s = scores()
        row = lax.broadcasted_iota(jnp.int32, s.shape, 0)
        col = lax.broadcasted_iota(jnp.int32, s.shape, 1)
        mask = col <= row
        if padded_len != seq_len:                       # static check
            mask = mask & ((ki * t + col) < seq_len)
        online_update(jnp.where(mask, s, -jnp.inf))
        # TODO(synk): dropout on the attention weights for p > 0 would need
        # pltpu.prng_seed / pltpu.prng_random_bits masking; p == 0 is identity.
        o_ref[0] = (
            acc_sc[...] * pl.reciprocal(l_sc[...], approx=True)
        ).astype(o_ref.dtype)


def _causal_attention(qkv, *, t, seq_len, out_dtype):
    """qkv: (3, B, Cp, H) with Cp % t == 0  ->  (B, Cp, H) attention output."""
    _, B, Cp, H = qkv.shape
    n_t = Cp // t
    grid = (B, n_t, n_t)
    scale = 1.0 / math.sqrt(H)

    kernel = functools.partial(
        _attn_kernel, t=t, seq_len=seq_len, padded_len=Cp, scale=scale)

    item = qkv.dtype.itemsize
    out_item = jnp.dtype(out_dtype).itemsize
    flops = 2 * 2 * B * Cp * Cp * H // 2               # causal half (QK^T + PV)
    transcendentals = B * Cp * Cp // 2
    bytes_accessed = int(
        B * Cp * H * item                              # Q (each tile read once)
        + B * (n_t + 1) * Cp * H * item                # causal K+V stream
        + B * Cp * H * out_item)
    need = (3 * 2 * t * H * item                       # dbl-buffered q/k/v tiles
            + 2 * t * H * out_item                     # dbl-buffered out tile
            + (t * H + 2 * t) * 4)                     # f32 softmax state

    q_spec = pl.BlockSpec((1, 1, t, H), lambda b, qi, ki: (0, b, qi, 0))
    # Clamp to the diagonal: upper-triangle grid steps re-use the previous
    # block so no K/V DMA is issued for fully-masked steps.
    # (If DMA is still exposed on v5e, pipeline_mode=pl.Buffered(3) here.)
    k_spec = pl.BlockSpec(
        (1, 1, t, H), lambda b, qi, ki: (1, b, jnp.minimum(qi, ki), 0))
    v_spec = pl.BlockSpec(
        (1, 1, t, H), lambda b, qi, ki: (2, b, jnp.minimum(qi, ki), 0))

    return pl.pallas_call(
        kernel,
        out_shape=jax.ShapeDtypeStruct((B, Cp, H), out_dtype),
        grid_spec=pltpu.PrefetchScalarGridSpec(
            num_scalar_prefetch=0,
            grid=grid,
            in_specs=[q_spec, k_spec, v_spec],
            out_specs=pl.BlockSpec((1, t, H), lambda b, qi, ki: (b, qi, 0)),
            scratch_shapes=[
                pltpu.VMEM((t, 1), jnp.float32),       # running max
                pltpu.VMEM((t, 1), jnp.float32),       # running sum
                pltpu.VMEM((t, H), jnp.float32),       # output accumulator
            ],
        ),
        compiler_params=pltpu.CompilerParams(
            dimension_semantics=("parallel", "parallel", "arbitrary"),
            vmem_limit_bytes=_vmem_limit(need),
        ),
        cost_estimate=pl.CostEstimate(
            flops=int(flops), transcendentals=int(transcendentals),
            bytes_accessed=bytes_accessed),
    )(qkv, qkv, qkv)


# ---------------------------------------------------------------------------
# Public wrapper: the Head.forward equivalent
# ---------------------------------------------------------------------------
def head_forward(x, wq, wk, wv, *, dropout_p=0.0, t_seq=256,
                 compute_dtype=jnp.bfloat16):
    """One causal self-attention head (nano-GPT `Head`), dropout p == 0.

    x:  (B, C, D)
    wq, wk, wv: (D, H) -- transposed w.r.t. torch nn.Linear's (H, D) weight.
    Returns (B, C, H) in x.dtype.
    """
    if dropout_p != 0.0:
        # TODO(synk): dropout p > 0 would need pltpu.prng_* masking in-kernel.
        raise NotImplementedError("dropout p > 0 is not implemented")

    B, C, D = x.shape
    t = min(t_seq, _round_up(C, 8))                    # seq tile (mult of 8)
    Cp = _round_up(C, t)                               # pad, don't assert
    if Cp != C:
        x = jnp.pad(x, ((0, 0), (0, Cp - C), (0, 0)))

    # bf16 MXU operands; both kernels accumulate in f32 and keep the softmax
    # state in f32 scratch.
    xc = x.astype(compute_dtype)
    wqc = wq.astype(compute_dtype)
    wkc = wk.astype(compute_dtype)
    wvc = wv.astype(compute_dtype)

    qkv = _qkv_projection(xc, wqc, wkc, wvc, tc=t, out_dtype=compute_dtype)
    out = _causal_attention(qkv, t=t, seq_len=C, out_dtype=x.dtype)
    if Cp != C:
        out = out[:, :C, :]
    return out


if __name__ == "__main__":
    # Small nano-GPT-ish head: B=2, context C=512, embed D=64, head size H=32.
    # C=512 with t=256 gives a (2, 2, 2) attention grid so the causal block
    # skip, the clamped K/V index maps and the parallel axes (B * Cp/t = 4
    # steps, enough for v7x's two TensorCores) are actually exercised.
    B, C, D, H = 2, 512, 64, 32
    dropout = 0.0

    key = jax.random.PRNGKey(0)
    kx, kq, kk, kv = jax.random.split(key, 4)
    x = jax.random.normal(kx, (B, C, D), dtype=jnp.float32)
    # nn.Linear(D, H, bias=False) weight is (H, D); we store the transpose.
    wq = jax.random.normal(kq, (D, H), dtype=jnp.float32) * 0.02
    wk = jax.random.normal(kk, (D, H), dtype=jnp.float32) * 0.02
    wv = jax.random.normal(kv, (D, H), dtype=jnp.float32) * 0.02

    y = head_forward(x, wq, wk, wv, dropout_p=dropout)
    jax.block_until_ready(y)

    # Plain-JAX f32 reference (same math as the PyTorch Head, dropout p = 0).
    q_ref = x @ wq
    k_ref = x @ wk
    v_ref = x @ wv
    att = (q_ref @ jnp.swapaxes(k_ref, -1, -2)) / math.sqrt(H)
    tril = jnp.tril(jnp.ones((C, C), dtype=bool))
    att = jnp.where(tril[None], att, -jnp.inf)
    att = jax.nn.softmax(att, axis=-1)
    ref = att @ v_ref

    assert y.shape == (B, C, H)
    err = float(jnp.max(jnp.abs(y.astype(jnp.float32) - ref)))
    # bf16 MXU operands + approximate reciprocal => a few 1e-3 absolute error.
    assert err < 2e-2, err
    print("KERNEL_OK")
</pallas_src>

<mosaic_0001>
module attributes {stable_mosaic.version = 11 : i64} {
  func.func @_qkv_proj_kernel(%arg0: i32, %arg1: i32, %arg2: memref<1x256x64xbf16, #tpu.memory_space<vmem>>, %arg3: memref<64x32xbf16, #tpu.memory_space<vmem>>, %arg4: memref<64x32xbf16, #tpu.memory_space<vmem>>, %arg5: memref<64x32xbf16, #tpu.memory_space<vmem>>, %arg6: memref<3x1x256x32xbf16, #tpu.memory_space<vmem>>) attributes {dimension_semantics = [#tpu.dimension_semantics<parallel>, #tpu.dimension_semantics<parallel>], iteration_bounds = array<i64: 2, 2>, scalar_prefetch = 0 : i64, scratch_operands = 0 : i64, tpu.core_type = #tpu.core_type<tc>, window_params = [{transform_indices = @transform_0, window_bounds = array<i64: 1, 256, 64>}, {pipeline_mode = #tpu.pipeline_mode<synchronous>, transform_indices = @transform_1, window_bounds = array<i64: 64, 32>}, {pipeline_mode = #tpu.pipeline_mode<synchronous>, transform_indices = @transform_2, window_bounds = array<i64: 64, 32>}, {pipeline_mode = #tpu.pipeline_mode<synchronous>, transform_indices = @transform_3, window_bounds = array<i64: 64, 32>}, {transform_indices = @transform_4, window_bounds = array<i64: 3, 1, 256, 32>}]} {
    %c0 = arith.constant 0 : index
    %c0_0 = arith.constant 0 : index
    %c0_1 = arith.constant 0 : index
    %0 = vector.load %arg2[%c0, %c0_0, %c0_1] : memref<1x256x64xbf16, #tpu.memory_space<vmem>>, vector<1x256x64xbf16>
    %1 = vector.shape_cast %0 : vector<1x256x64xbf16> to vector<256x64xbf16>
    %c0_2 = arith.constant 0 : index
    %c0_3 = arith.constant 0 : index
    %2 = vector.load %arg3[%c0_2, %c0_3] : memref<64x32xbf16, #tpu.memory_space<vmem>>, vector<64x32xbf16>
    %cst = arith.constant dense<0.000000e+00> : vector<256x32xf32>
    %3 = tpu.matmul %1, %2, %cst {dimension_numbers = #tpu.dot_dimension_numbers<[1], [0], [0], [1], [0, 0, 1, 1], [], []>} : vector<256x64xbf16>, vector<64x32xbf16>, vector<256x32xf32> -> vector<256x32xf32>
    %4 = arith.truncf %3 : vector<256x32xf32> to vector<256x32xbf16>
    %c0_4 = arith.constant 0 : index
    %c0_5 = arith.constant 0 : index
    %c0_6 = arith.constant 0 : index
    %c0_7 = arith.constant 0 : index
    %5 = vector.load %arg6[%c0_4, %c0_5, %c0_6, %c0_7] : memref<3x1x256x32xbf16, #tpu.memory_space<vmem>>, vector<1x1x256x32xbf16>
    %6 = vector.shape_cast %5 : vector<1x1x256x32xbf16> to vector<256x32xbf16>
    %7 = vector.shape_cast %4 : vector<256x32xbf16> to vector<1x1x256x32xbf16>
    tpu.vector_store %arg6[%c0_4, %c0_5, %c0_6, %c0_7], %7 {strides = array<i32>} : memref<3x1x256x32xbf16, #tpu.memory_space<vmem>>, vector<1x1x256x32xbf16>,
    %c0_8 = arith.constant 0 : index
    %c0_9 = arith.constant 0 : index
    %8 = vector.load %arg4[%c0_8, %c0_9] : memref<64x32xbf16, #tpu.memory_space<vmem>>, vector<64x32xbf16>
    %cst_10 = arith.constant dense<0.000000e+00> : vector<256x32xf32>
    %9 = tpu.matmul %1, %8, %cst_10 {dimension_numbers = #tpu.dot_dimension_numbers<[1], [0], [0], [1], [0, 0, 1, 1], [], []>} : vector<256x64xbf16>, vector<64x32xbf16>, vector<256x32xf32> -> vector<256x32xf32>
    %10 = arith.truncf %9 : vector<256x32xf32> to vector<256x32xbf16>
    %c1 = arith.constant 1 : index
    %c0_11 = arith.constant 0 : index
    %c0_12 = arith.constant 0 : index
    %c0_13 = arith.constant 0 : index
    %11 = vector.load %arg6[%c1, %c0_11, %c0_12, %c0_13] : memref<3x1x256x32xbf16, #tpu.memory_space<vmem>>, vector<1x1x256x32xbf16>
    %12 = vector.shape_cast %11 : vector<1x1x256x32xbf16> to vector<256x32xbf16>
    %13 = vector.shape_cast %10 : vector<256x32xbf16> to vector<1x1x256x32xbf16>
    tpu.vector_store %arg6[%c1, %c0_11, %c0_12, %c0_13], %13 {strides = array<i32>} : memref<3x1x256x32xbf16, #tpu.memory_space<vmem>>, vector<1x1x256x32xbf16>,
    %c0_14 = arith.constant 0 : index
    %c0_15 = arith.constant 0 : index
    %14 = vector.load %arg5[%c0_14, %c0_15] : memref<64x32xbf16, #tpu.memory_space<vmem>>, vector<64x32xbf16>
    %cst_16 = arith.constant dense<0.000000e+00> : vector<256x32xf32>
    %15 = tpu.matmul %1, %14, %cst_16 {dimension_numbers = #tpu.dot_dimension_numbers<[1], [0], [0], [1], [0, 0, 1, 1], [], []>} : vector<256x64xbf16>, vector<64x32xbf16>, vector<256x32xf32> -> vector<256x32xf32>
    %16 = arith.truncf %15 : vector<256x32xf32> to vector<256x32xbf16>
    %c2 = arith.constant 2 : index
    %c0_17 = arith.constant 0 : index
    %c0_18 = arith.constant 0 : index
    %c0_19 = arith.constant 0 : index
    %17 = vector.load %arg6[%c2, %c0_17, %c0_18, %c0_19] : memref<3x1x256x32xbf16, #tpu.memory_space<vmem>>, vector<1x1x256x32xbf16>
    %18 = vector.shape_cast %17 : vector<1x1x256x32xbf16> to vector<256x32xbf16>
    %19 = vector.shape_cast %16 : vector<256x32xbf16> to vector<1x1x256x32xbf16>
    tpu.vector_store %arg6[%c2, %c0_17, %c0_18, %c0_19], %19 {strides = array<i32>} : memref<3x1x256x32xbf16, #tpu.memory_space<vmem>>, vector<1x1x256x32xbf16>,
    return
  }
  func.func @transform_0(%arg0: i32, %arg1: i32) -> (i32, i32, i32) {
    %c0_i32 = arith.constant 0 : i32
    %c0_i32_0 = arith.constant 0 : i32
    return %arg0, %arg1, %c0_i32 : i32, i32, i32
  }
  func.func @transform_1(%arg0: i32, %arg1: i32) -> (i32, i32) {
    %c0_i32 = arith.constant 0 : i32
    %c0_i32_0 = arith.constant 0 : i32
    %c0_i32_1 = arith.constant 0 : i32
    return %c0_i32, %c0_i32_0 : i32, i32
  }
  func.func @transform_2(%arg0: i32, %arg1: i32) -> (i32, i32) {
    %c0_i32 = arith.constant 0 : i32
    %c0_i32_0 = arith.constant 0 : i32
    %c0_i32_1 = arith.constant 0 : i32
    return %c0_i32, %c0_i32_0 : i32, i32
  }
  func.func @transform_3(%arg0: i32, %arg1: i32) -> (i32, i32) {
    %c0_i32 = arith.constant 0 : i32
    %c0_i32_0 = arith.constant 0 : i32
    %c0_i32_1 = arith.constant 0 : i32
    return %c0_i32, %c0_i32_0 : i32, i32
  }
  func.func @transform_4(%arg0: i32, %arg1: i32) -> (i32, i32, i32, i32) {
    %c0_i32 = arith.constant 0 : i32
    %c0_i32_0 = arith.constant 0 : i32
    %c0_i32_1 = arith.constant 0 : i32
    return %c0_i32, %arg0, %arg1, %c0_i32_0 : i32, i32, i32, i32
  }
}

</mosaic_0001>

<llo_original>
// kernel: tpu_custom_call.1
$region0: #{tpu_custom_call.1}
  #allocation0 [shape = 'u32[]', space=smem, size = 0x4, offset = 0x4, fixed_abs, tag = 'smem constant byte address 0x4 - core index']
  #allocation1 [shape = 'u32[144,128]{1,0:T(1,128)}', space=vmem, size = 0x12000, scoped, tag = 'internal scratch']
  %s0 = inlined_call_operand.vmem [shape: bf16[2,512,64], index: 0, kind: input, shape index: {}]
  %s1 = inlined_call_operand.vmem [shape: bf16[64,32], index: 1, kind: input, shape index: {}]
  %s2 = inlined_call_operand.vmem [shape: bf16[64,32], index: 2, kind: input, shape index: {}]
  %s3 = inlined_call_operand.vmem [shape: bf16[64,32], index: 3, kind: input, shape index: {}]
  %s4 = inlined_call_operand.vmem [shape: bf16[3,2,512,32], index: 4, kind: output, shape index: {}]
  %s5 = sld [smem:[#allocation0]]
  $region86: #{tpu_custom_call.1} parent=0
    _
  %s7 = ssub.s32 1, %s5
  %s8 = scalar_select 0, %s7, %s5
  $region1: #{tpu_custom_call.1} parent=0
    #allocation2 [shape = 'u8[393216]{0}', space=vmem, size = 0x60000, scoped, tag = 'output window, operand 0']
    loop: start=0, step=1, limit=6
    $region2: #{tpu_custom_call.1} parent=1 // loop_pre_header
      _
    $region3: #{tpu_custom_call.1} parent=1 // loop_header
      %s10 = sphi 0, %s14
      %p11 = scmp.ge.s32.totalorder %s10, 6
      %s17 = sphi 0, %s29
      %s18 = sphi 0, %s25
      %s19 = sphi 0, %s17
      %s20 = sphi 0, %s18
      %s21 = sphi 0, %s19
      %s22 = sphi 0, %s20
      %s34 = sphi 0, %s36
      %s37 = sphi 0, %s34
      %s38 = sphi 0, %s37
      %s54 = sphi 0, %s38
      %s58 = sphi 0, %s58
      %s60 = sphi 0, %s58
      %s61 = sphi 0, %s60
      %s75 = sphi 0, %s61
      %s79 = sphi 0, %s79
      %s81 = sphi 0, %s79
      %s82 = sphi 0, %s81
      %s96 = sphi 0, %s82
      %s100 = sphi 0, %s100
      %s102 = sphi 0, %s100
      %s103 = sphi 0, %s102
      %s117 = sphi 0, %s103
      %s125 = sphi 0, %s127
      %s128 = sphi 0, %s125
      %s129 = sphi 0, %s128
      %s145 = sphi 0, %s129
    $region4: #{tpu_custom_call.1} parent=1 // loop_header_branch
      %13 = sbr.rel (%p11) target = $region8
    $region5: #{tpu_custom_call.1} parent=1 // loop_body
      %s15 = ssub.s32 %s10, 1
      %s16 = ssub.s32 %s10, 2
      %s23 = sadd.s32 1, %s18
      %p24 = scmp.ge.s32.totalorder %s23, 2
      %s25 = scalar_select %p24, 0, %s23
      %s26 = sadd.s32 1, %s17
      %s27 = scalar_select %p24, %s26, %s17
      %p28 = scmp.ge.s32.totalorder %s27, 2
      %s29 = scalar_select %p28, 0, %s27
      %s30 = ssub.s32 %s17, %s29
      %s31 = ssub.s32 %s18, %s25
      %s32 = sor.u32 %s30, %s31
      %p33 = scmp.eq.s32.totalorder %s32, 0
      %s35 = sadd.s32 %s34, 1
      %s36 = scalar_select %p33, %s34, %s35
      %p39 = pneg %p33
      %p40 = scmp.eq.s32.totalorder %s10, 3
      %p41 = por %p39, %p40
      %p42 = scmp.ne.s32.totalorder %s34, %s37
      %p43 = scmp.eq.s32.totalorder %s10, 0
      %p44 = por %p42, %p43
      %p45 = scmp.ne.s32.totalorder %s34, %s37
      %p46 = scmp.eq.s32.totalorder %s15, 3
      %p47 = por %p45, %p46
      %p48 = scmp.ne.s32.totalorder %s37, %s38
      %p49 = scmp.eq.s32.totalorder %s15, 0
      %p50 = por %p48, %p49
      %p51 = scmp.ne.s32.totalorder %s37, %s38
      %p52 = scmp.eq.s32.totalorder %s16, 3
      %p53 = por %p51, %p52
      %p55 = scmp.ne.s32.totalorder %s38, %s54
      %p56 = scmp.eq.s32.totalorder %s16, 0
      %p57 = por %p55, %p56
      %s59 = sadd.s32 %s58, 1
      %p62 = scmp.eq.s32.totalorder %s10, 3
      %p63 = scmp.ne.s32.totalorder %s58, %s60
      %p64 = scmp.eq.s32.totalorder %s10, 0
      %p65 = por %p63, %p64
      %p66 = scmp.ne.s32.totalorder %s58, %s60
      %p67 = scmp.eq.s32.totalorder %s15, 3
      %p68 = por %p66, %p67
      %p69 = scmp.ne.s32.totalorder %s60, %s61
      %p70 = scmp.eq.s32.totalorder %s15, 0
      %p71 = por %p69, %p70
      %p72 = scmp.ne.s32.totalorder %s60, %s61
      %p73 = scmp.eq.s32.totalorder %s16, 3
      %p74 = por %p72, %p73
      %p76 = scmp.ne.s32.totalorder %s61, %s75
      %p77 = scmp.eq.s32.totalorder %s16, 0
      %p78 = por %p76, %p77
      %s80 = sadd.s32 %s79, 1
      %p83 = scmp.eq.s32.totalorder %s10, 3
      %p84 = scmp.ne.s32.totalorder %s79, %s81
      %p85 = scmp.eq.s32.totalorder %s10, 0
      %p86 = por %p84, %p85
      %p87 = scmp.ne.s32.totalorder %s79, %s81
      %p88 = scmp.eq.s32.totalorder %s15, 3
      %p89 = por %p87, %p88
      %p90 = scmp.ne.s32.totalorder %s81, %s82
      %p91 = scmp.eq.s32.totalorder %s15, 0
      %p92 = por %p90, %p91
      %p93 = scmp.ne.s32.totalorder %s81, %s82
      %p94 = scmp.eq.s32.totalorder %s16, 3
      %p95 = por %p93, %p94
      %p97 = scmp.ne.s32.totalorder %s82, %s96
      %p98 = scmp.eq.s32.totalorder %s16, 0
      %p99 = por %p97, %p98
      %s101 = sadd.s32 %s100, 1
      %p104 = scmp.eq.s32.totalorder %s10, 3
      %p105 = scmp.ne.s32.totalorder %s100, %s102
      %p106 = scmp.eq.s32.totalorder %s10, 0
      %p107 = por %p105, %p106
      %p108 = scmp.ne.s32.totalorder %s100, %s102
      %p109 = scmp.eq.s32.totalorder %s15, 3
      %p110 = por %p108, %p109
      %p111 = scmp.ne.s32.totalorder %s102, %s103
      %p112 = scmp.eq.s32.totalorder %s15, 0
      %p113 = por %p111, %p112
      %p114 = scmp.ne.s32.totalorder %s102, %s103
      %p115 = scmp.eq.s32.totalorder %s16, 3
      %p116 = por %p114, %p115
      %p118 = scmp.ne.s32.totalorder %s103, %s117
      %p119 = scmp.eq.s32.totalorder %s16, 0
      %p120 = por %p118, %p119
      %s121 = ssub.s32 %s17, %s29
      %s122 = ssub.s32 %s18, %s25
      %s123 = sor.u32 %s121, %s122
      %p124 = scmp.eq.s32.totalorder %s123, 0
      %s126 = sadd.s32 %s125, 1
      %s127 = scalar_select %p124, %s125, %s126
      %p130 = pneg %p124
      %p131 = scmp.eq.s32.totalorder %s10, 3
      %p132 = por %p130, %p131
      %p133 = scmp.ne.s32.totalorder %s125, %s128
      %p134 = scmp.eq.s32.totalorder %s10, 0
      %p135 = por %p133, %p134
      %p136 = scmp.ne.s32.totalorder %s125, %s128
      %p137 = scmp.eq.s32.totalorder %s15, 3
      %p138 = por %p136, %p137
      %p139 = scmp.ne.s32.totalorder %s128, %s129
      %p140 = scmp.eq.s32.totalorder %s15, 0
      %p141 = por %p139, %p140
      %p142 = scmp.ne.s32.totalorder %s128, %s129
      %p143 = scmp.eq.s32.totalorder %s16, 3
      %p144 = por %p142, %p143
      %p146 = scmp.ne.s32.totalorder %s129, %s145
      %p147 = scmp.eq.s32.totalorder %s16, 0
      %p148 = por %p146, %p147
      %p149 = scmp.le.s32.totalorder 1, %s10
      %p150 = scmp.lt.s32.totalorder %s10, 5
      %p151 = pnand %p149, %p150
      %p152 = pneg %p151
      // Predicated region
      $region9: #{tpu_custom_call.1} parent=5 // pred_check
        _
      $region10: #{tpu_custom_call.1} parent=5 // pred_check_branch
        %154 = sbr.rel (%p151) target = $region12
      $region11: #{tpu_custom_call.1} parent=5 // pred_region
        %s155 = ssub.s32 %s10, 1
        // Predicated region
        $region13: #{tpu_custom_call.1} parent=11 // pred_check
          %p156 = pneg %p71
        $region14: #{tpu_custom_call.1} parent=11 // pred_check_branch
          %158 = sbr.rel (%p156) target = $region16
        $region15: #{tpu_custom_call.1} parent=11 // pred_region
          _
        $region16: #{tpu_custom_call.1} parent=11 // pred_fallthru
          _
        // Predicated region
        $region17: #{tpu_custom_call.1} parent=11 // pred_check
          %p159 = pneg %p92
        $region18: #{tpu_custom_call.1} parent=11 // pred_check_branch
          %161 = sbr.rel (%p159) target = $region20
        $region19: #{tpu_custom_call.1} parent=11 // pred_region
          _
        $region20: #{tpu_custom_call.1} parent=11 // pred_fallthru
          _
        // Predicated region
        $region21: #{tpu_custom_call.1} parent=11 // pred_check
          %p162 = pneg %p113
        $region22: #{tpu_custom_call.1} parent=11 // pred_check_branch
          %164 = sbr.rel (%p162) target = $region24
        $region23: #{tpu_custom_call.1} parent=11 // pred_region
          _
        $region24: #{tpu_custom_call.1} parent=11 // pred_fallthru
          _
      $region12: #{tpu_custom_call.1} parent=5 // pred_fallthru
        _
      %p165 = scmp.lt.s32.totalorder %s10, 4
      // Predicated region
      $region25: #{tpu_custom_call.1} parent=5 // pred_check
        %p166 = pneg %p165
      $region26: #{tpu_custom_call.1} parent=5 // pred_check_branch
        %168 = sbr.rel (%p166) target = $region28
      $region27: #{tpu_custom_call.1} parent=5 // pred_region
        // Predicated region
        $region29: #{tpu_custom_call.1} parent=27 // pred_check
          %p169 = pneg %p44
        $region30: #{tpu_custom_call.1} parent=27 // pred_check_branch
          %171 = sbr.rel (%p169) target = $region32
        $region31: #{tpu_custom_call.1} parent=27 // pred_region
          %s172 = smul.u32 32, %s18
          %p173 = scmp.lt.s32.totalorder %s17, 1
          %s174 = scalar_select %p173, %s17, 1
          %p175 = scmp.lt.s32.totalorder %s172, 63
          %s176 = scalar_select %p175, %s172, 63
          %s177 = smul.addr %s174, 64
          %s178 = sadd.s32 %s176, %s177
          %s179 = smul.addr %s178, 4
          %s180 = scalar_lea.vmem %s0, %s179
          %s181 = smul.u32 32, %s18
        $region32: #{tpu_custom_call.1} parent=27 // pred_fallthru
          _
      $region28: #{tpu_custom_call.1} parent=5 // pred_fallthru
        _
      %p182 = scmp.le.s32.totalorder 1, %s10
      %p183 = scmp.lt.s32.totalorder %s10, 5
      %p184 = pnand %p182, %p183
      %p185 = pneg %p184
      // Predicated region
      $region33: #{tpu_custom_call.1} parent=5 // pred_check
        _
      $region34: #{tpu_custom_call.1} parent=5 // pred_check_branch
        %187 = sbr.rel (%p184) target = $region36
      $region35: #{tpu_custom_call.1} parent=5 // pred_region
        %s188 = ssub.s32 %s10, 1
        %s189 = smul.u32 32, %s20
        %p190 = scmp.lt.s32.totalorder %s19, 1
        %s191 = scalar_select %p190, %s19, 1
        %p192 = scmp.lt.s32.totalorder %s189, 63
        %s193 = scalar_select %p192, %s189, 63
        %s194 = smul.addr %s191, 64
        %s195 = sadd.s32 %s193, %s194
        %s196 = smul.addr %s195, 4
        %s197 = scalar_lea.vmem %s0, %s196
        %p198 = pneg %p50
        %p199 = pneg %p47
        %p200 = pneg %p71
        %p201 = pneg %p68
        %p202 = pneg %p92
        %p203 = pneg %p89
        %p204 = pneg %p113
        %p205 = pneg %p110
        %p206 = pneg %p141
        %p207 = pneg %p138
        %s208 = sand.u32 %s128, 1
        %s209 = sand.u32 %s128, 1
        %s210 = smul.addr %s209, 384
        %s211 = scalar_lea.vmem [#allocation2], %s210
        %s212 = smul.u32 32, %s20
        %p213 = scmp.lt.s32.totalorder %s19, 1
        %s214 = scalar_select %p213, %s19, 1
        %p215 = scmp.lt.s32.totalorder %s212, 63
        %s216 = scalar_select %p215, %s212, 63
        %s217 = smul.addr %s214, 64
        %s218 = sadd.s32 %s216, %s217
        %s219 = smul.addr %s218, 4
        %s220 = scalar_lea.vmem %s0, %s219
        %s221 = smul.u32 32, %s20
        %s222 = smul.u32 32, %s20
        %v224 = vld [vmem:[%s220] sm:$0xf]
        %v225 = vld [vmem:[%s220 + $0x4] sm:$0xf]
        %v226 = vld [vmem:[%s220 + $0x8] sm:$0xf]
        %v227 = vld [vmem:[%s220 + $0xc] sm:$0xf]
        %v228 = vld [vmem:[%s220 + $0x10] sm:$0xf]
        %v229 = vld [vmem:[%s220 + $0x14] sm:$0xf]
        %v230 = vld [vmem:[%s220 + $0x18] sm:$0xf]
        %v231 = vld [vmem:[%s220 + $0x1c] sm:$0xf]
        %v232 = vld [vmem:[%s220 + $0x20] sm:$0xf]
        %v233 = vld [vmem:[%s220 + $0x24] sm:$0xf]
        %v234 = vld [vmem:[%s220 + $0x28] sm:$0xf]
        %v235 = vld [vmem:[%s220 + $0x2c] sm:$0xf]
        %v236 = vld [vmem:[%s220 + $0x30] sm:$0xf]
        %v237 = vld [vmem:[%s220 + $0x34] sm:$0xf]
        %v238 = vld [vmem:[%s220 + $0x38] sm:$0xf]
        %v239 = vld [vmem:[%s220 + $0x3c] sm:$0xf]
        %v240 = vld [vmem:[%s220 + $0x40] sm:$0xf]
        %v241 = vld [vmem:[%s220 + $0x44] sm:$0xf]
        %v242 = vld [vmem:[%s220 + $0x48] sm:$0xf]
        %v243 = vld [vmem:[%s220 + $0x4c] sm:$0xf]
        %v244 = vld [vmem:[%s220 + $0x50] sm:$0xf]
        %v245 = vld [vmem:[%s220 + $0x54] sm:$0xf]
        %v246 = vld [vmem:[%s220 + $0x58] sm:$0xf]
        %v247 = vld [vmem:[%s220 + $0x5c] sm:$0xf]
        %v248 = vld [vmem:[%s220 + $0x60] sm:$0xf]
        %v249 = vld [vmem:[%s220 + $0x64] sm:$0xf]
        %v250 = vld [vmem:[%s220 + $0x68] sm:$0xf]
        %v251 = vld [vmem:[%s220 + $0x6c] sm:$0xf]
        %v252 = vld [vmem:[%s220 + $0x70] sm:$0xf]
        %v253 = vld [vmem:[%s220 + $0x74] sm:$0xf]
        %v254 = vld [vmem:[%s220 + $0x78] sm:$0xf]
        %v255 = vld [vmem:[%s220 + $0x7c] sm:$0xf]
        %v256 = vld [vmem:[%s1] sm:$0xf]
        %v257 = vld [vmem:[%s1 + $0x4] sm:$0xf]
        %v258 = vld [vmem:[%s1 + $0x8] sm:$0xf]
        %v259 = vld [vmem:[%s1 + $0xc] sm:$0xf]
        %v260 = vld [vmem:[%s1 + $0x10] sm:$0xf]
        %v261 = vld [vmem:[%s1 + $0x14] sm:$0xf]
        %v262 = vld [vmem:[%s1 + $0x18] sm:$0xf]
        %v263 = vld [vmem:[%s1 + $0x1c] sm:$0xf]
        %v296 = vunpack.c.l.b16 %v224
        %v297 = vunpack.c.l.b16 %v225
        %v298 = vunpack.c.l.b16 %v226
        %v299 = vunpack.c.l.b16 %v227
        %v300 = vunpack.c.l.b16 %v228
        %v301 = vunpack.c.l.b16 %v229
        %v302 = vunpack.c.l.b16 %v230
        %v303 = vunpack.c.l.b16 %v231
        %v304 = vunpack.c.l.b16 %v232
        %v305 = vunpack.c.l.b16 %v233
        %v306 = vunpack.c.l.b16 %v234
        %v307 = vunpack.c.l.b16 %v235
        %v308 = vunpack.c.l.b16 %v236
        %v309 = vunpack.c.l.b16 %v237
        %v310 = vunpack.c.l.b16 %v238
        %v311 = vunpack.c.l.b16 %v239
        %v312 = vunpack.c.l.b16 %v240
        %v313 = vunpack.c.l.b16 %v241
        %v314 = vunpack.c.l.b16 %v242
        %v315 = vunpack.c.l.b16 %v243
        %v316 = vunpack.c.l.b16 %v244
        %v317 = vunpack.c.l.b16 %v245
        %v318 = vunpack.c.l.b16 %v246
        %v319 = vunpack.c.l.b16 %v247
        %v320 = vunpack.c.l.b16 %v248
        %v321 = vunpack.c.l.b16 %v249
        %v322 = vunpack.c.l.b16 %v250
        %v323 = vunpack.c.l.b16 %v251
        %v324 = vunpack.c.l.b16 %v252
        %v325 = vunpack.c.l.b16 %v253
        %v326 = vunpack.c.l.b16 %v254
        %v327 = vunpack.c.l.b16 %v255
        %v328 = vpack.c.b16 %v297, %v296
        %v329 = vpack.c.b16 %v299, %v298
        %v330 = vpack.c.b16 %v301, %v300
        %v331 = vpack.c.b16 %v303, %v302
        %v332 = vpack.c.b16 %v305, %v304
        %v333 = vpack.c.b16 %v307, %v306
        %v334 = vpack.c.b16 %v309, %v308
        %v335 = vpack.c.b16 %v311, %v310
        %v336 = vpack.c.b16 %v313, %v312
        %v337 = vpack.c.b16 %v315, %v314
        %v338 = vpack.c.b16 %v317, %v316
        %v339 = vpack.c.b16 %v319, %v318
        %v340 = vpack.c.b16 %v321, %v320
        %v341 = vpack.c.b16 %v323, %v322
        %v342 = vpack.c.b16 %v325, %v324
        %v343 = vpack.c.b16 %v327, %v326
        %v352 = vunpack.c.l.b16 %v256
        %v353 = vunpack.c.l.b16 %v257
        %v354 = vunpack.c.l.b16 %v258
        %v355 = vunpack.c.l.b16 %v259
        %v356 = vunpack.c.l.b16 %v260
        %v357 = vunpack.c.l.b16 %v261
        %v358 = vunpack.c.l.b16 %v262
        %v359 = vunpack.c.l.b16 %v263
        %v360 = vpack.c.b16 %v353, %v352
        %v361 = vpack.c.b16 %v355, %v354
        %v362 = vpack.c.b16 %v357, %v356
        %v363 = vpack.c.b16 %v359, %v358
        %vm368 = vcmask 523264
        %v370 = vsel %vm368, %v328, 0
        %v373 = vsel %vm368, %v329, 0
        %v376 = vsel %vm368, %v330, 0
        %v379 = vsel %vm368, %v331, 0
        %v382 = vsel %vm368, %v332, 0
        %v385 = vsel %vm368, %v333, 0
        %v388 = vsel %vm368, %v334, 0
        %v391 = vsel %vm368, %v335, 0
        %v394 = vsel %vm368, %v336, 0
        %v397 = vsel %vm368, %v337, 0
        %v400 = vsel %vm368, %v338, 0
        %v403 = vsel %vm368, %v339, 0
        %v406 = vsel %vm368, %v340, 0
        %v409 = vsel %vm368, %v341, 0
        %v412 = vsel %vm368, %v342, 0
        %v415 = vsel %vm368, %v343, 0
        %417 = vmatprep.subr.bf16.mxu0 0
        %418 = vmatpush1.bf16.msra.mxu0 %v360
        %419 = vmatprep.subr.bf16.mxu0 0
        %420 = vmatpush1.bf16.msra.mxu0 %v361
        %421 = vmatprep.subr.bf16.mxu0 0
        %422 = vmatpush1.bf16.msra.mxu0 %v362
        %423 = vmatprep.subr.bf16.mxu0 0
        %424 = vmatpush1.bf16.msra.mxu0 %v363
        %425 = vmatprep.subr.bf16.mxu0 0
        %426 = vmatpush1.bf16.msra.mxu0 0
        %427 = vmatprep.subr.bf16.mxu0 0
        %428 = vmatpush1.bf16.msra.mxu0 0
        %429 = vmatprep.subr.bf16.mxu0 0
        %430 = vmatpush1.bf16.msra.mxu0 0
        %431 = vmatprep.subr.bf16.mxu0 0
        %432 = vmatpush1.bf16.msra.mxu0 0
        %433 = vmatprep.subr.bf16.mxu0 0
        %434 = vmatpush1.bf16.msra.mxu0 0
        %435 = vmatprep.subr.bf16.mxu0 0
        %436 = vmatpush1.bf16.msra.mxu0 0
        %437 = vmatprep.subr.bf16.mxu0 0
        %438 = vmatpush1.bf16.msra.mxu0 0
        %439 = vmatprep.subr.bf16.mxu0 0
        %440 = vmatpush1.bf16.msra.mxu0 0
        %441 = vmatprep.subr.bf16.mxu0 0
        %442 = vmatpush1.bf16.msra.mxu0 0
        %443 = vmatprep.subr.bf16.mxu0 0
        %444 = vmatpush1.bf16.msra.mxu0 0
        %445 = vmatprep.subr.bf16.mxu0 0
        %446 = vmatpush1.bf16.msra.mxu0 0
        %447 = vmatprep.subr.bf16.mxu0 0
        %448 = vmatpush1.bf16.msra.mxu0 0
        %449 = vmatprep.mubr.bf16.mxu0 0
        %450 = vmatmul.mubr.bf16.gmra.mrb[0].mxu0 %v370
        %v451 = vpop.f32.mrb[0].mxu0
        %v452 = vadd.f32 0.0, %v451
        %v453 = vpop.f32.mrb[0].mxu0
        %v454 = vpop.f32.mrb[0].mxu0
        %v455 = vadd.f32 0.0, %v454
        %v456 = vpop.f32.mrb[0].mxu0
        %457 = vmatprep.mubr.bf16.mxu0 0
        %458 = vmatmul.mubr.bf16.gmra.mrb[0].mxu0 %v373
        %v459 = vpop.f32.mrb[0].mxu0
        %v460 = vadd.f32 0.0, %v459
        %v461 = vpop.f32.mrb[0].mxu0
        %v462 = vpop.f32.mrb[0].mxu0
        %v463 = vadd.f32 0.0, %v462
        %v464 = vpop.f32.mrb[0].mxu0
        %465 = vmatprep.mubr.bf16.mxu0 0
        %466 = vmatmul.mubr.bf16.gmra.mrb[0].mxu0 %v376
        %v467 = vpop.f32.mrb[0].mxu0
        %v468 = vadd.f32 0.0, %v467
        %v469 = vpop.f32.mrb[0].mxu0
        %v470 = vpop.f32.mrb[0].mxu0
        %v471 = vadd.f32 0.0, %v470
        %v472 = vpop.f32.mrb[0].mxu0
        %473 = vmatprep.mubr.bf16.mxu0 0
        %474 = vmatmul.mubr.bf16.gmra.mrb[0].mxu0 %v379
        %v475 = vpop.f32.mrb[0].mxu0
        %v476 = vadd.f32 0.0, %v475
        %v477 = vpop.f32.mrb[0].mxu0
        %v478 = vpop.f32.mrb[0].mxu0
        %v479 = vadd.f32 0.0, %v478
        %v480 = vpop.f32.mrb[0].mxu0
        %481 = vmatprep.mubr.bf16.mxu0 0
        %482 = vmatmul.mubr.bf16.gmra.mrb[0].mxu0 %v382
        %v483 = vpop.f32.mrb[0].mxu0
        %v484 = vadd.f32 0.0, %v483
        %v485 = vpop.f32.mrb[0].mxu0
        %v486 = vpop.f32.mrb[0].mxu0
        %v487 = vadd.f32 0.0, %v486
        %v488 = vpop.f32.mrb[0].mxu0
        %489 = vmatprep.mubr.bf16.mxu0 0
        %490 = vmatmul.mubr.bf16.gmra.mrb[0].mxu0 %v385
        %v491 = vpop.f32.mrb[0].mxu0
        %v492 = vadd.f32 0.0, %v491
        %v493 = vpop.f32.mrb[0].mxu0
        %v494 = vpop.f32.mrb[0].mxu0
        %v495 = vadd.f32 0.0, %v494
        %v496 = vpop.f32.mrb[0].mxu0
        %497 = vmatprep.mubr.bf16.mxu0 0
        %498 = vmatmul.mubr.bf16.gmra.mrb[0].mxu0 %v388
        %v499 = vpop.f32.mrb[0].mxu0
        %v500 = vadd.f32 0.0, %v499
        %v501 = vpop.f32.mrb[0].mxu0
        %v502 = vpop.f32.mrb[0].mxu0
        %v503 = vadd.f32 0.0, %v502
        %v504 = vpop.f32.mrb[0].mxu0
        %505 = vmatprep.mubr.bf16.mxu0 0
        %506 = vmatmul.mubr.bf16.gmra.mrb[0].mxu0 %v391
        %v507 = vpop.f32.mrb[0].mxu0
        %v508 = vadd.f32 0.0, %v507
        %v509 = vpop.f32.mrb[0].mxu0
        %v510 = vpop.f32.mrb[0].mxu0
        %v511 = vadd.f32 0.0, %v510
        %v512 = vpop.f32.mrb[0].mxu0
        %513 = vmatprep.mubr.bf16.mxu0 0
        %514 = vmatmul.mubr.bf16.gmra.mrb[0].mxu0 %v394
        %v515 = vpop.f32.mrb[0].mxu0
        %v516 = vadd.f32 0.0, %v515
        %v517 = vpop.f32.mrb[0].mxu0
        %v518 = vpop.f32.mrb[0].mxu0
        %v519 = vadd.f32 0.0, %v518
        %v520 = vpop.f32.mrb[0].mxu0
        %521 = vmatprep.mubr.bf16.mxu0 0
        %522 = vmatmul.mubr.bf16.gmra.mrb[0].mxu0 %v397
        %v523 = vpop.f32.mrb[0].mxu0
        %v524 = vadd.f32 0.0, %v523
        %v525 = vpop.f32.mrb[0].mxu0
        %v526 = vpop.f32.mrb[0].mxu0
        %v527 = vadd.f32 0.0, %v526
        %v528 = vpop.f32.mrb[0].mxu0
        %529 = vmatprep.mubr.bf16.mxu0 0
        %530 = vmatmul.mubr.bf16.gmra.mrb[0].mxu0 %v400
        %v531 = vpop.f32.mrb[0].mxu0
        %v532 = vadd.f32 0.0, %v531
        %v533 = vpop.f32.mrb[0].mxu0
        %v534 = vpop.f32.mrb[0].mxu0
        %v535 = vadd.f32 0.0, %v534
        %v536 = vpop.f32.mrb[0].mxu0
        %537 = vmatprep.mubr.bf16.mxu0 0
        %538 = vmatmul.mubr.bf16.gmra.mrb[0].mxu0 %v403
        %v539 = vpop.f32.mrb[0].mxu0
        %v540 = vadd.f32 0.0, %v539
        %v541 = vpop.f32.mrb[0].mxu0
        %v542 = vpop.f32.mrb[0].mxu0
        %v543 = vadd.f32 0.0, %v542
        %v544 = vpop.f32.mrb[0].mxu0
        %545 = vmatprep.mubr.bf16.mxu0 0
        %546 = vmatmul.mubr.bf16.gmra.mrb[0].mxu0 %v406
        %v547 = vpop.f32.mrb[0].mxu0
        %v548 = vadd.f32 0.0, %v547
        %v549 = vpop.f32.mrb[0].mxu0
        %v550 = vpop.f32.mrb[0].mxu0
        %v551 = vadd.f32 0.0, %v550
        %v552 = vpop.f32.mrb[0].mxu0
        %553 = vmatprep.mubr.bf16.mxu0 0
        %554 = vmatmul.mubr.bf16.gmra.mrb[0].mxu0 %v409
        %v555 = vpop.f32.mrb[0].mxu0
        %v556 = vadd.f32 0.0, %v555
        %v557 = vpop.f32.mrb[0].mxu0
        %v558 = vpop.f32.mrb[0].mxu0
        %v559 = vadd.f32 0.0, %v558
        %v560 = vpop.f32.mrb[0].mxu0
        %561 = vmatprep.mubr.bf16.mxu0 0
        %562 = vmatmul.mubr.bf16.gmra.mrb[0].mxu0 %v412
        %v563 = vpop.f32.mrb[0].mxu0
        %v564 = vadd.f32 0.0, %v563
        %v565 = vpop.f32.mrb[0].mxu0
        %v566 = vpop.f32.mrb[0].mxu0
        %v567 = vadd.f32 0.0, %v566
        %v568 = vpop.f32.mrb[0].mxu0
        %569 = vmatprep.mubr.bf16.mxu0 0
        %570 = vmatmul.mubr.bf16.gmra.mrb[0].mxu0 %v415
        %v571 = vpop.f32.mrb[0].mxu0
        %v572 = vadd.f32 0.0, %v571
        %v573 = vpop.f32.mrb[0].mxu0
        %v574 = vpop.f32.mrb[0].mxu0
        %v575 = vadd.f32 0.0, %v574
        %v576 = vpop.f32.mrb[0].mxu0
        %577 = vdwg.mxu0
        %v578 = vpack.c.bf16 %v455, %v452
        %v579 = vpack.c.bf16 %v463, %v460
        %v580 = vpack.c.bf16 %v471, %v468
        %v581 = vpack.c.bf16 %v479, %v476
        %v582 = vpack.c.bf16 %v487, %v484
        %v583 = vpack.c.bf16 %v495, %v492
        %v584 = vpack.c.bf16 %v503, %v500
        %v585 = vpack.c.bf16 %v511, %v508
        %v586 = vpack.c.bf16 %v519, %v516
        %v587 = vpack.c.bf16 %v527, %v524
        %v588 = vpack.c.bf16 %v535, %v532
        %v589 = vpack.c.bf16 %v543, %v540
        %v590 = vpack.c.bf16 %v551, %v548
        %v591 = vpack.c.bf16 %v559, %v556
        %v592 = vpack.c.bf16 %v567, %v564
        %v593 = vpack.c.bf16 %v575, %v572
        %v610 = vunpack.c.l.b16 %v578
        %v611 = vunpack.c.h.b16 %v578
        %v612 = vunpack.c.l.b16 %v579
        %v613 = vunpack.c.h.b16 %v579
        %v614 = vunpack.c.l.b16 %v580
        %v615 = vunpack.c.h.b16 %v580
        %v616 = vunpack.c.l.b16 %v581
        %v617 = vunpack.c.h.b16 %v581
        %v618 = vunpack.c.l.b16 %v582
        %v619 = vunpack.c.h.b16 %v582
        %v620 = vunpack.c.l.b16 %v583
        %v621 = vunpack.c.h.b16 %v583
        %v622 = vunpack.c.l.b16 %v584
        %v623 = vunpack.c.h.b16 %v584
        %v624 = vunpack.c.l.b16 %v585
        %v625 = vunpack.c.h.b16 %v585
        %v626 = vunpack.c.l.b16 %v586
        %v627 = vunpack.c.h.b16 %v586
        %v628 = vunpack.c.l.b16 %v587
        %v629 = vunpack.c.h.b16 %v587
        %v630 = vunpack.c.l.b16 %v588
        %v631 = vunpack.c.h.b16 %v588
        %v632 = vunpack.c.l.b16 %v589
        %v633 = vunpack.c.h.b16 %v589
        %v634 = vunpack.c.l.b16 %v590
        %v635 = vunpack.c.h.b16 %v590
        %v636 = vunpack.c.l.b16 %v591
        %v637 = vunpack.c.h.b16 %v591
        %v638 = vunpack.c.l.b16 %v592
        %v639 = vunpack.c.h.b16 %v592
        %v640 = vunpack.c.l.b16 %v593
        %v641 = vunpack.c.h.b16 %v593
        %v642 = vpack.c.b16 %v610, %v610
        %v643 = vpack.c.b16 %v611, %v611
        %v644 = vpack.c.b16 %v612, %v612
        %v645 = vpack.c.b16 %v613, %v613
        %v646 = vpack.c.b16 %v614, %v614
        %v647 = vpack.c.b16 %v615, %v615
        %v648 = vpack.c.b16 %v616, %v616
        %v649 = vpack.c.b16 %v617, %v617
        %v650 = vpack.c.b16 %v618, %v618
        %v651 = vpack.c.b16 %v619, %v619
        %v652 = vpack.c.b16 %v620, %v620
        %v653 = vpack.c.b16 %v621, %v621
        %v654 = vpack.c.b16 %v622, %v622
        %v655 = vpack.c.b16 %v623, %v623
        %v656 = vpack.c.b16 %v624, %v624
        %v657 = vpack.c.b16 %v625, %v625
        %v658 = vpack.c.b16 %v626, %v626
        %v659 = vpack.c.b16 %v627, %v627
        %v660 = vpack.c.b16 %v628, %v628
        %v661 = vpack.c.b16 %v629, %v629
        %v662 = vpack.c.b16 %v630, %v630
        %v663 = vpack.c.b16 %v631, %v631
        %v664 = vpack.c.b16 %v632, %v632
        %v665 = vpack.c.b16 %v633, %v633
        %v666 = vpack.c.b16 %v634, %v634
        %v667 = vpack.c.b16 %v635, %v635
        %v668 = vpack.c.b16 %v636, %v636
        %v669 = vpack.c.b16 %v637, %v637
        %v670 = vpack.c.b16 %v638, %v638
        %v671 = vpack.c.b16 %v639, %v639
        %v672 = vpack.c.b16 %v640, %v640
        %v673 = vpack.c.b16 %v641, %v641
        %vm706 = vcmask 257024
        %707 = vst.msk [vmem:[%s211] sm:$0xf] %vm706, %v642
        %708 = vst.msk [vmem:[%s211 + $0x4] sm:$0xf] %vm706, %v643
        %709 = vst.msk [vmem:[%s211 + $0x8] sm:$0xf] %vm706, %v644
        %710 = vst.msk [vmem:[%s211 + $0xc] sm:$0xf] %vm706, %v645
        %711 = vst.msk [vmem:[%s211 + $0x10] sm:$0xf] %vm706, %v646
        %712 = vst.msk [vmem:[%s211 + $0x14] sm:$0xf] %vm706, %v647
        %713 = vst.msk [vmem:[%s211 + $0x18] sm:$0xf] %vm706, %v648
        %714 = vst.msk [vmem:[%s211 + $0x1c] sm:$0xf] %vm706, %v649
        %715 = vst.msk [vmem:[%s211 + $0x20] sm:$0xf] %vm706, %v650
        %716 = vst.msk [vmem:[%s211 + $0x24] sm:$0xf] %vm706, %v651
        %717 = vst.msk [vmem:[%s211 + $0x28] sm:$0xf] %vm706, %v652
        %718 = vst.msk [vmem:[%s211 + $0x2c] sm:$0xf] %vm706, %v653
        %719 = vst.msk [vmem:[%s211 + $0x30] sm:$0xf] %vm706, %v654
        %720 = vst.msk [vmem:[%s211 + $0x34] sm:$0xf] %vm706, %v655
        %721 = vst.msk [vmem:[%s211 + $0x38] sm:$0xf] %vm706, %v656
        %722 = vst.msk [vmem:[%s211 + $0x3c] sm:$0xf] %vm706, %v657
        %723 = vst.msk [vmem:[%s211 + $0x40] sm:$0xf] %vm706, %v658
        %724 = vst.msk [vmem:[%s211 + $0x44] sm:$0xf] %vm706, %v659
        %725 = vst.msk [vmem:[%s211 + $0x48] sm:$0xf] %vm706, %v660
        %726 = vst.msk [vmem:[%s211 + $0x4c] sm:$0xf] %vm706, %v661
        %727 = vst.msk [vmem:[%s211 + $0x50] sm:$0xf] %vm706, %v662
        %728 = vst.msk [vmem:[%s211 + $0x54] sm:$0xf] %vm706, %v663
        %729 = vst.msk [vmem:[%s211 + $0x58] sm:$0xf] %vm706, %v664
        %730 = vst.msk [vmem:[%s211 + $0x5c] sm:$0xf] %vm706, %v665
        %731 = vst.msk [vmem:[%s211 + $0x60] sm:$0xf] %vm706, %v666
        %732 = vst.msk [vmem:[%s211 + $0x64] sm:$0xf] %vm706, %v667
        %733 = vst.msk [vmem:[%s211 + $0x68] sm:$0xf] %vm706, %v668
        %734 = vst.msk [vmem:[%s211 + $0x6c] sm:$0xf] %vm706, %v669
        %735 = vst.msk [vmem:[%s211 + $0x70] sm:$0xf] %vm706, %v670
        %736 = vst.msk [vmem:[%s211 + $0x74] sm:$0xf] %vm706, %v671
        %737 = vst.msk [vmem:[%s211 + $0x78] sm:$0xf] %vm706, %v672
        %738 = vst.msk [vmem:[%s211 + $0x7c] sm:$0xf] %vm706, %v673
        %v739 = vld [vmem:[%s2] sm:$0xf]
        %v740 = vld [vmem:[%s2 + $0x4] sm:$0xf]
        %v741 = vld [vmem:[%s2 + $0x8] sm:$0xf]
        %v742 = vld [vmem:[%s2 + $0xc] sm:$0xf]
        %v743 = vld [vmem:[%s2 + $0x10] sm:$0xf]
        %v744 = vld [vmem:[%s2 + $0x14] sm:$0xf]
        %v745 = vld [vmem:[%s2 + $0x18] sm:$0xf]
        %v746 = vld [vmem:[%s2 + $0x1c] sm:$0xf]
        %v755 = vunpack.c.l.b16 %v739
        %v756 = vunpack.c.l.b16 %v740
        %v757 = vunpack.c.l.b16 %v741
        %v758 = vunpack.c.l.b16 %v742
        %v759 = vunpack.c.l.b16 %v743
        %v760 = vunpack.c.l.b16 %v744
        %v761 = vunpack.c.l.b16 %v745
        %v762 = vunpack.c.l.b16 %v746
        %v763 = vpack.c.b16 %v756, %v755
        %v764 = vpack.c.b16 %v758, %v757
        %v765 = vpack.c.b16 %v760, %v759
        %v766 = vpack.c.b16 %v762, %v761
        %771 = vmatprep.subr.bf16.mxu0 0
        %772 = vmatpush1.bf16.msra.mxu0 %v763
        %773 = vmatprep.subr.bf16.mxu0 0
        %774 = vmatpush1.bf16.msra.mxu0 %v764
        %775 = vmatprep.subr.bf16.mxu0 0
        %776 = vmatpush1.bf16.msra.mxu0 %v765
        %777 = vmatprep.subr.bf16.mxu0 0
        %778 = vmatpush1.bf16.msra.mxu0 %v766
        %779 = vmatprep.subr.bf16.mxu0 0
        %780 = vmatpush1.bf16.msra.mxu0 0
        %781 = vmatprep.subr.bf16.mxu0 0
        %782 = vmatpush1.bf16.msra.mxu0 0
        %783 = vmatprep.subr.bf16.mxu0 0
        %784 = vmatpush1.bf16.msra.mxu0 0
        %785 = vmatprep.subr.bf16.mxu0 0
        %786 = vmatpush1.bf16.msra.mxu0 0
        %787 = vmatprep.subr.bf16.mxu0 0
        %788 = vmatpush1.bf16.msra.mxu0 0
        %789 = vmatprep.subr.bf16.mxu0 0
        %790 = vmatpush1.bf16.msra.mxu0 0
        %791 = vmatprep.subr.bf16.mxu0 0
        %792 = vmatpush1.bf16.msra.mxu0 0
        %793 = vmatprep.subr.bf16.mxu0 0
        %794 = vmatpush1.bf16.msra.mxu0 0
        %795 = vmatprep.subr.bf16.mxu0 0
        %796 = vmatpush1.bf16.msra.mxu0 0
        %797 = vmatprep.subr.bf16.mxu0 0
        %798 = vmatpush1.bf16.msra.mxu0 0
        %799 = vmatprep.subr.bf16.mxu0 0
        %800 = vmatpush1.bf16.msra.mxu0 0
        %801 = vmatprep.subr.bf16.mxu0 0
        %802 = vmatpush1.bf16.msra.mxu0 0
        %803 = vmatprep.mubr.bf16.mxu0 0
        %804 = vmatmul.mubr.bf16.gmra.mrb[0].mxu0 %v370
        %v805 = vpop.f32.mrb[0].mxu0
        %v806 = vadd.f32 0.0, %v805
        %v807 = vpop.f32.mrb[0].mxu0
        %v808 = vpop.f32.mrb[0].mxu0
        %v809 = vadd.f32 0.0, %v808
        %v810 = vpop.f32.mrb[0].mxu0
        %811 = vmatprep.mubr.bf16.mxu0 0
        %812 = vmatmul.mubr.bf16.gmra.mrb[0].mxu0 %v373
        %v813 = vpop.f32.mrb[0].mxu0
        %v814 = vadd.f32 0.0, %v813
        %v815 = vpop.f32.mrb[0].mxu0
        %v816 = vpop.f32.mrb[0].mxu0
        %v817 = vadd.f32 0.0, %v816
        %v818 = vpop.f32.mrb[0].mxu0
        %819 = vmatprep.mubr.bf16.mxu0 0
        %820 = vmatmul.mubr.bf16.gmra.mrb[0].mxu0 %v376
        %v821 = vpop.f32.mrb[0].mxu0
        %v822 = vadd.f32 0.0, %v821
        %v823 = vpop.f32.mrb[0].mxu0
        %v824 = vpop.f32.mrb[0].mxu0
        %v825 = vadd.f32 0.0, %v824
        %v826 = vpop.f32.mrb[0].mxu0
        %827 = vmatprep.mubr.bf16.mxu0 0
        %828 = vmatmul.mubr.bf16.gmra.mrb[0].mxu0 %v379
        %v829 = vpop.f32.mrb[0].mxu0
        %v830 = vadd.f32 0.0, %v829
        %v831 = vpop.f32.mrb[0].mxu0
        %v832 = vpop.f32.mrb[0].mxu0
        %v833 = vadd.f32 0.0, %v832
        %v834 = vpop.f32.mrb[0].mxu0
        %835 = vmatprep.mubr.bf16.mxu0 0
        %836 = vmatmul.mubr.bf16.gmra.mrb[0].mxu0 %v382
        %v837 = vpop.f32.mrb[0].mxu0
        %v838 = vadd.f32 0.0, %v837
        %v839 = vpop.f32.mrb[0].mxu0
        %v840 = vpop.f32.mrb[0].mxu0
        %v841 = vadd.f32 0.0, %v840
        %v842 = vpop.f32.mrb[0].mxu0
        %843 = vmatprep.mubr.bf16.mxu0 0
        %844 = vmatmul.mubr.bf16.gmra.mrb[0].mxu0 %v385
        %v845 = vpop.f32.mrb[0].mxu0
        %v846 = vadd.f32 0.0, %v845
        %v847 = vpop.f32.mrb[0].mxu0
        %v848 = vpop.f32.mrb[0].mxu0
        %v849 = vadd.f32 0.0, %v848
        %v850 = vpop.f32.mrb[0].mxu0
        %851 = vmatprep.mubr.bf16.mxu0 0
        %852 = vmatmul.mubr.bf16.gmra.mrb[0].mxu0 %v388
        %v853 = vpop.f32.mrb[0].mxu0
        %v854 = vadd.f32 0.0, %v853
        %v855 = vpop.f32.mrb[0].mxu0
        %v856 = vpop.f32.mrb[0].mxu0
        %v857 = vadd.f32 0.0, %v856
        %v858 = vpop.f32.mrb[0].mxu0
        %859 = vmatprep.mubr.bf16.mxu0 0
        %860 = vmatmul.mubr.bf16.gmra.mrb[0].mxu0 %v391
        %v861 = vpop.f32.mrb[0].mxu0
        %v862 = vadd.f32 0.0, %v861
        %v863 = vpop.f32.mrb[0].mxu0
        %v864 = vpop.f32.mrb[0].mxu0
        %v865 = vadd.f32 0.0, %v864
        %v866 = vpop.f32.mrb[0].mxu0
        %867 = vmatprep.mubr.bf16.mxu0 0
        %868 = vmatmul.mubr.bf16.gmra.mrb[0].mxu0 %v394
        %v869 = vpop.f32.mrb[0].mxu0
        %v870 = vadd.f32 0.0, %v869
        %v871 = vpop.f32.mrb[0].mxu0
        %v872 = vpop.f32.mrb[0].mxu0
        %v873 = vadd.f32 0.0, %v872
        %v874 = vpop.f32.mrb[0].mxu0
        %875 = vmatprep.mubr.bf16.mxu0 0
        %876 = vmatmul.mubr.bf16.gmra.mrb[0].mxu0 %v397
        %v877 = vpop.f32.mrb[0].mxu0
        %v878 = vadd.f32 0.0, %v877
        %v879 = vpop.f32.mrb[0].mxu0
        %v880 = vpop.f32.mrb[0].mxu0
        %v881 = vadd.f32 0.0, %v880
        %v882 = vpop.f32.mrb[0].mxu0
        %883 = vmatprep.mubr.bf16.mxu0 0
        %884 = vmatmul.mubr.bf16.gmra.mrb[0].mxu0 %v400
        %v885 = vpop.f32.mrb[0].mxu0
        %v886 = vadd.f32 0.0, %v885
        %v887 = vpop.f32.mrb[0].mxu0
        %v888 = vpop.f32.mrb[0].mxu0
        %v889 = vadd.f32 0.0, %v888
        %v890 = vpop.f32.mrb[0].mxu0
        %891 = vmatprep.mubr.bf16.mxu0 0
        %892 = vmatmul.mubr.bf16.gmra.mrb[0].mxu0 %v403
        %v893 = vpop.f32.mrb[0].mxu0
        %v894 = vadd.f32 0.0, %v893
        %v895 = vpop.f32.mrb[0].mxu0
        %v896 = vpop.f32.mrb[0].mxu0
        %v897 = vadd.f32 0.0, %v896
        %v898 = vpop.f32.mrb[0].mxu0
        %899 = vmatprep.mubr.bf16.mxu0 0
        %900 = vmatmul.mubr.bf16.gmra.mrb[0].mxu0 %v406
        %v901 = vpop.f32.mrb[0].mxu0
        %v902 = vadd.f32 0.0, %v901
        %v903 = vpop.f32.mrb[0].mxu0
        %v904 = vpop.f32.mrb[0].mxu0
        %v905 = vadd.f32 0.0, %v904
        %v906 = vpop.f32.mrb[0].mxu0
        %907 = vmatprep.mubr.bf16.mxu0 0
        %908 = vmatmul.mubr.bf16.gmra.mrb[0].mxu0 %v409
        %v909 = vpop.f32.mrb[0].mxu0
        %v910 = vadd.f32 0.0, %v909
        %v911 = vpop.f32.mrb[0].mxu0
        %v912 = vpop.f32.mrb[0].mxu0
        %v913 = vadd.f32 0.0, %v912
        %v914 = vpop.f32.mrb[0].mxu0
        %915 = vmatprep.mubr.bf16.mxu0 0
        %916 = vmatmul.mubr.bf16.gmra.mrb[0].mxu0 %v412
        %v917 = vpop.f32.mrb[0].mxu0
        %v918 = vadd.f32 0.0, %v917
        %v919 = vpop.f32.mrb[0].mxu0
        %v920 = vpop.f32.mrb[0].mxu0
        %v921 = vadd.f32 0.0, %v920
        %v922 = vpop.f32.mrb[0].mxu0
        %923 = vmatprep.mubr.bf16.mxu0 0
        %924 = vmatmul.mubr.bf16.gmra.mrb[0].mxu0 %v415
        %v925 = vpop.f32.mrb[0].mxu0
        %v926 = vadd.f32 0.0, %v925
        %v927 = vpop.f32.mrb[0].mxu0
        %v928 = vpop.f32.mrb[0].mxu0
        %v929 = vadd.f32 0.0, %v928
        %v930 = vpop.f32.mrb[0].mxu0
        %931 = vdwg.mxu0
        %v932 = vpack.c.bf16 %v809, %v806
        %v933 = vpack.c.bf16 %v817, %v814
        %v934 = vpack.c.bf16 %v825, %v822
        %v935 = vpack.c.bf16 %v833, %v830
        %v936 = vpack.c.bf16 %v841, %v838
        %v937 = vpack.c.bf16 %v849, %v846
        %v938 = vpack.c.bf16 %v857, %v854
        %v939 = vpack.c.bf16 %v865, %v862
        %v940 = vpack.c.bf16 %v873, %v870
        %v941 = vpack.c.bf16 %v881, %v878
        %v942 = vpack.c.bf16 %v889, %v886
        %v943 = vpack.c.bf16 %v897, %v894
        %v944 = vpack.c.bf16 %v905, %v902
        %v945 = vpack.c.bf16 %v913, %v910
        %v946 = vpack.c.bf16 %v921, %v918
        %v947 = vpack.c.bf16 %v929, %v926
        %v964 = vunpack.c.l.b16 %v932
        %v965 = vunpack.c.h.b16 %v932
        %v966 = vunpack.c.l.b16 %v933
        %v967 = vunpack.c.h.b16 %v933
        %v968 = vunpack.c.l.b16 %v934
        %v969 = vunpack.c.h.b16 %v934
        %v970 = vunpack.c.l.b16 %v935
        %v971 = vunpack.c.h.b16 %v935
        %v972 = vunpack.c.l.b16 %v936
        %v973 = vunpack.c.h.b16 %v936
        %v974 = vunpack.c.l.b16 %v937
        %v975 = vunpack.c.h.b16 %v937
        %v976 = vunpack.c.l.b16 %v938
        %v977 = vunpack.c.h.b16 %v938
        %v978 = vunpack.c.l.b16 %v939
        %v979 = vunpack.c.h.b16 %v939
        %v980 = vunpack.c.l.b16 %v940
        %v981 = vunpack.c.h.b16 %v940
        %v982 = vunpack.c.l.b16 %v941
        %v983 = vunpack.c.h.b16 %v941
        %v984 = vunpack.c.l.b16 %v942
        %v985 = vunpack.c.h.b16 %v942
        %v986 = vunpack.c.l.b16 %v943
        %v987 = vunpack.c.h.b16 %v943
        %v988 = vunpack.c.l.b16 %v944
        %v989 = vunpack.c.h.b16 %v944
        %v990 = vunpack.c.l.b16 %v945
        %v991 = vunpack.c.h.b16 %v945
        %v992 = vunpack.c.l.b16 %v946
        %v993 = vunpack.c.h.b16 %v946
        %v994 = vunpack.c.l.b16 %v947
        %v995 = vunpack.c.h.b16 %v947
        %v996 = vpack.c.b16 %v964, %v964
        %v997 = vpack.c.b16 %v965, %v965
        %v998 = vpack.c.b16 %v966, %v966
        %v999 = vpack.c.b16 %v967, %v967
        %v1000 = vpack.c.b16 %v968, %v968
        %v1001 = vpack.c.b16 %v969, %v969
        %v1002 = vpack.c.b16 %v970, %v970
        %v1003 = vpack.c.b16 %v971, %v971
        %v1004 = vpack.c.b16 %v972, %v972
        %v1005 = vpack.c.b16 %v973, %v973
        %v1006 = vpack.c.b16 %v974, %v974
        %v1007 = vpack.c.b16 %v975, %v975
        %v1008 = vpack.c.b16 %v976, %v976
        %v1009 = vpack.c.b16 %v977, %v977
        %v1010 = vpack.c.b16 %v978, %v978
        %v1011 = vpack.c.b16 %v979, %v979
        %v1012 = vpack.c.b16 %v980, %v980
        %v1013 = vpack.c.b16 %v981, %v981
        %v1014 = vpack.c.b16 %v982, %v982
        %v1015 = vpack.c.b16 %v983, %v983
        %v1016 = vpack.c.b16 %v984, %v984
        %v1017 = vpack.c.b16 %v985, %v985
        %v1018 = vpack.c.b16 %v986, %v986
        %v1019 = vpack.c.b16 %v987, %v987
        %v1020 = vpack.c.b16 %v988, %v988
        %v1021 = vpack.c.b16 %v989, %v989
        %v1022 = vpack.c.b16 %v990, %v990
        %v1023 = vpack.c.b16 %v991, %v991
        %v1024 = vpack.c.b16 %v992, %v992
        %v1025 = vpack.c.b16 %v993, %v993
        %v1026 = vpack.c.b16 %v994, %v994
        %v1027 = vpack.c.b16 %v995, %v995
        %s1060 = scalar_lea.vmem %s211, 128 [#allocation2]
        %1061 = vst.msk [vmem:[%s1060] sm:$0xf] %vm706, %v996
        %1062 = vst.msk [vmem:[%s1060 + $0x4] sm:$0xf] %vm706, %v997
        %1063 = vst.msk [vmem:[%s1060 + $0x8] sm:$0xf] %vm706, %v998
        %1064 = vst.msk [vmem:[%s1060 + $0xc] sm:$0xf] %vm706, %v999
        %1065 = vst.msk [vmem:[%s1060 + $0x10] sm:$0xf] %vm706, %v1000
        %1066 = vst.msk [vmem:[%s1060 + $0x14] sm:$0xf] %vm706, %v1001
        %1067 = vst.msk [vmem:[%s1060 + $0x18] sm:$0xf] %vm706, %v1002
        %1068 = vst.msk [vmem:[%s1060 + $0x1c] sm:$0xf] %vm706, %v1003
        %1069 = vst.msk [vmem:[%s1060 + $0x20] sm:$0xf] %vm706, %v1004
        %1070 = vst.msk [vmem:[%s1060 + $0x24] sm:$0xf] %vm706, %v1005
        %1071 = vst.msk [vmem:[%s1060 + $0x28] sm:$0xf] %vm706, %v1006
        %1072 = vst.msk [vmem:[%s1060 + $0x2c] sm:$0xf] %vm706, %v1007
        %1073 = vst.msk [vmem:[%s1060 + $0x30] sm:$0xf] %vm706, %v1008
        %1074 = vst.msk [vmem:[%s1060 + $0x34] sm:$0xf] %vm706, %v1009
        %1075 = vst.msk [vmem:[%s1060 + $0x38] sm:$0xf] %vm706, %v1010
        %1076 = vst.msk [vmem:[%s1060 + $0x3c] sm:$0xf] %vm706, %v1011
        %1077 = vst.msk [vmem:[%s1060 + $0x40] sm:$0xf] %vm706, %v1012
        %1078 = vst.msk [vmem:[%s1060 + $0x44] sm:$0xf] %vm706, %v1013
        %1079 = vst.msk [vmem:[%s1060 + $0x48] sm:$0xf] %vm706, %v1014
        %1080 = vst.msk [vmem:[%s1060 + $0x4c] sm:$0xf] %vm706, %v1015
        %1081 = vst.msk [vmem:[%s1060 + $0x50] sm:$0xf] %vm706, %v1016
        %1082 = vst.msk [vmem:[%s1060 + $0x54] sm:$0xf] %vm706, %v1017
        %1083 = vst.msk [vmem:[%s1060 + $0x58] sm:$0xf] %vm706, %v1018
        %1084 = vst.msk [vmem:[%s1060 + $0x5c] sm:$0xf] %vm706, %v1019
        %1085 = vst.msk [vmem:[%s1060 + $0x60] sm:$0xf] %vm706, %v1020
        %1086 = vst.msk [vmem:[%s1060 + $0x64] sm:$0xf] %vm706, %v1021
        %1087 = vst.msk [vmem:[%s1060 + $0x68] sm:$0xf] %vm706, %v1022
        %1088 = vst.msk [vmem:[%s1060 + $0x6c] sm:$0xf] %vm706, %v1023
        %1089 = vst.msk [vmem:[%s1060 + $0x70] sm:$0xf] %vm706, %v1024
        %1090 = vst.msk [vmem:[%s1060 + $0x74] sm:$0xf] %vm706, %v1025
        %1091 = vst.msk [vmem:[%s1060 + $0x78] sm:$0xf] %vm706, %v1026
        %1092 = vst.msk [vmem:[%s1060 + $0x7c] sm:$0xf] %vm706, %v1027
        %v1093 = vld [vmem:[%s3] sm:$0xf]
        %v1094 = vld [vmem:[%s3 + $0x4] sm:$0xf]
        %v1095 = vld [vmem:[%s3 + $0x8] sm:$0xf]
        %v1096 = vld [vmem:[%s3 + $0xc] sm:$0xf]
        %v1097 = vld [vmem:[%s3 + $0x10] sm:$0xf]
        %v1098 = vld [vmem:[%s3 + $0x14] sm:$0xf]
        %v1099 = vld [vmem:[%s3 + $0x18] sm:$0xf]
        %v1100 = vld [vmem:[%s3 + $0x1c] sm:$0xf]
        %v1109 = vunpack.c.l.b16 %v1093
        %v1110 = vunpack.c.l.b16 %v1094
        %v1111 = vunpack.c.l.b16 %v1095
        %v1112 = vunpack.c.l.b16 %v1096
        %v1113 = vunpack.c.l.b16 %v1097
        %v1114 = vunpack.c.l.b16 %v1098
        %v1115 = vunpack.c.l.b16 %v1099
        %v1116 = vunpack.c.l.b16 %v1100
        %v1117 = vpack.c.b16 %v1110, %v1109
        %v1118 = vpack.c.b16 %v1112, %v1111
        %v1119 = vpack.c.b16 %v1114, %v1113
        %v1120 = vpack.c.b16 %v1116, %v1115
        %1125 = vmatprep.subr.bf16.mxu0 0
        %1126 = vmatpush1.bf16.msra.mxu0 %v1117
        %1127 = vmatprep.subr.bf16.mxu0 0
        %1128 = vmatpush1.bf16.msra.mxu0 %v1118
        %1129 = vmatprep.subr.bf16.mxu0 0
        %1130 = vmatpush1.bf16.msra.mxu0 %v1119
        %1131 = vmatprep.subr.bf16.mxu0 0
        %1132 = vmatpush1.bf16.msra.mxu0 %v1120
        %1133 = vmatprep.subr.bf16.mxu0 0
        %1134 = vmatpush1.bf16.msra.mxu0 0
        %1135 = vmatprep.subr.bf16.mxu0 0
        %1136 = vmatpush1.bf16.msra.mxu0 0
        %1137 = vmatprep.subr.bf16.mxu0 0
        %1138 = vmatpush1.bf16.msra.mxu0 0
        %1139 = vmatprep.subr.bf16.mxu0 0
        %1140 = vmatpush1.bf16.msra.mxu0 0
        %1141 = vmatprep.subr.bf16.mxu0 0
        %1142 = vmatpush1.bf16.msra.mxu0 0
        %1143 = vmatprep.subr.bf16.mxu0 0
        %1144 = vmatpush1.bf16.msra.mxu0 0
        %1145 = vmatprep.subr.bf16.mxu0 0
        %1146 = vmatpush1.bf16.msra.mxu0 0
        %1147 = vmatprep.subr.bf16.mxu0 0
        %1148 = vmatpush1.bf16.msra.mxu0 0
        %1149 = vmatprep.subr.bf16.mxu0 0
        %1150 = vmatpush1.bf16.msra.mxu0 0
        %1151 = vmatprep.subr.bf16.mxu0 0
        %1152 = vmatpush1.bf16.msra.mxu0 0
        %1153 = vmatprep.subr.bf16.mxu0 0
        %1154 = vmatpush1.bf16.msra.mxu0 0
        %1155 = vmatprep.subr.bf16.mxu0 0
        %1156 = vmatpush1.bf16.msra.mxu0 0
        %1157 = vmatprep.mubr.bf16.mxu0 0
        %1158 = vmatmul.mubr.bf16.gmra.mrb[0].mxu0 %v370
        %v1159 = vpop.f32.mrb[0].mxu0
        %v1160 = vadd.f32 0.0, %v1159
        %v1161 = vpop.f32.mrb[0].mxu0
        %v1162 = vpop.f32.mrb[0].mxu0
        %v1163 = vadd.f32 0.0, %v1162
        %v1164 = vpop.f32.mrb[0].mxu0
        %1165 = vmatprep.mubr.bf16.mxu0 0
        %1166 = vmatmul.mubr.bf16.gmra.mrb[0].mxu0 %v373
        %v1167 = vpop.f32.mrb[0].mxu0
        %v1168 = vadd.f32 0.0, %v1167
        %v1169 = vpop.f32.mrb[0].mxu0
        %v1170 = vpop.f32.mrb[0].mxu0
        %v1171 = vadd.f32 0.0, %v1170
        %v1172 = vpop.f32.mrb[0].mxu0
        %1173 = vmatprep.mubr.bf16.mxu0 0
        %1174 = vmatmul.mubr.bf16.gmra.mrb[0].mxu0 %v376
        %v1175 = vpop.f32.mrb[0].mxu0
        %v1176 = vadd.f32 0.0, %v1175
        %v1177 = vpop.f32.mrb[0].mxu0
        %v1178 = vpop.f32.mrb[0].mxu0
        %v1179 = vadd.f32 0.0, %v1178
        %v1180 = vpop.f32.mrb[0].mxu0
        %1181 = vmatprep.mubr.bf16.mxu0 0
        %1182 = vmatmul.mubr.bf16.gmra.mrb[0].mxu0 %v379
        %v1183 = vpop.f32.mrb[0].mxu0
        %v1184 = vadd.f32 0.0, %v1183
        %v1185 = vpop.f32.mrb[0].mxu0
        %v1186 = vpop.f32.mrb[0].mxu0
        %v1187 = vadd.f32 0.0, %v1186
        %v1188 = vpop.f32.mrb[0].mxu0
        %1189 = vmatprep.mubr.bf16.mxu0 0
        %1190 = vmatmul.mubr.bf16.gmra.mrb[0].mxu0 %v382
        %v1191 = vpop.f32.mrb[0].mxu0
        %v1192 = vadd.f32 0.0, %v1191
        %v1193 = vpop.f32.mrb[0].mxu0
        %v1194 = vpop.f32.mrb[0].mxu0
        %v1195 = vadd.f32 0.0, %v1194
        %v1196 = vpop.f32.mrb[0].mxu0
        %1197 = vmatprep.mubr.bf16.mxu0 0
        %1198 = vmatmul.mubr.bf16.gmra.mrb[0].mxu0 %v385
        %v1199 = vpop.f32.mrb[0].mxu0
        %v1200 = vadd.f32 0.0, %v1199
        %v1201 = vpop.f32.mrb[0].mxu0
        %v1202 = vpop.f32.mrb[0].mxu0
        %v1203 = vadd.f32 0.0, %v1202
        %v1204 = vpop.f32.mrb[0].mxu0
        %1205 = vmatprep.mubr.bf16.mxu0 0
        %1206 = vmatmul.mubr.bf16.gmra.mrb[0].mxu0 %v388
        %v1207 = vpop.f32.mrb[0].mxu0
        %v1208 = vadd.f32 0.0, %v1207
        %v1209 = vpop.f32.mrb[0].mxu0
        %v1210 = vpop.f32.mrb[0].mxu0
        %v1211 = vadd.f32 0.0, %v1210
        %v1212 = vpop.f32.mrb[0].mxu0
        %1213 = vmatprep.mubr.bf16.mxu0 0
        %1214 = vmatmul.mubr.bf16.gmra.mrb[0].mxu0 %v391
        %v1215 = vpop.f32.mrb[0].mxu0
        %v1216 = vadd.f32 0.0, %v1215
        %v1217 = vpop.f32.mrb[0].mxu0
        %v1218 = vpop.f32.mrb[0].mxu0
        %v1219 = vadd.f32 0.0, %v1218
        %v1220 = vpop.f32.mrb[0].mxu0
        %1221 = vmatprep.mubr.bf16.mxu0 0
        %1222 = vmatmul.mubr.bf16.gmra.mrb[0].mxu0 %v394
        %v1223 = vpop.f32.mrb[0].mxu0
        %v1224 = vadd.f32 0.0, %v1223
        %v1225 = vpop.f32.mrb[0].mxu0
        %v1226 = vpop.f32.mrb[0].mxu0
        %v1227 = vadd.f32 0.0, %v1226
        %v1228 = vpop.f32.mrb[0].mxu0
        %1229 = vmatprep.mubr.bf16.mxu0 0
        %1230 = vmatmul.mubr.bf16.gmra.mrb[0].mxu0 %v397
        %v1231 = vpop.f32.mrb[0].mxu0
        %v1232 = vadd.f32 0.0, %v1231
        %v1233 = vpop.f32.mrb[0].mxu0
        %v1234 = vpop.f32.mrb[0].mxu0
        %v1235 = vadd.f32 0.0, %v1234
        %v1236 = vpop.f32.mrb[0].mxu0
        %1237 = vmatprep.mubr.bf16.mxu0 0
        %1238 = vmatmul.mubr.bf16.gmra.mrb[0].mxu0 %v400
        %v1239 = vpop.f32.mrb[0].mxu0
        %v1240 = vadd.f32 0.0, %v1239
        %v1241 = vpop.f32.mrb[0].mxu0
        %v1242 = vpop.f32.mrb[0].mxu0
        %v1243 = vadd.f32 0.0, %v1242
        %v1244 = vpop.f32.mrb[0].mxu0
        %1245 = vmatprep.mubr.bf16.mxu0 0
        %1246 = vmatmul.mubr.bf16.gmra.mrb[0].mxu0 %v403
        %v1247 = vpop.f32.mrb[0].mxu0
        %v1248 = vadd.f32 0.0, %v1247
        %v1249 = vpop.f32.mrb[0].mxu0
        %v1250 = vpop.f32.mrb[0].mxu0
        %v1251 = vadd.f32 0.0, %v1250
        %v1252 = vpop.f32.mrb[0].mxu0
        %1253 = vmatprep.mubr.bf16.mxu0 0
        %1254 = vmatmul.mubr.bf16.gmra.mrb[0].mxu0 %v406
        %v1255 = vpop.f32.mrb[0].mxu0
        %v1256 = vadd.f32 0.0, %v1255
        %v1257 = vpop.f32.mrb[0].mxu0
        %v1258 = vpop.f32.mrb[0].mxu0
        %v1259 = vadd.f32 0.0, %v1258
        %v1260 = vpop.f32.mrb[0].mxu0
        %1261 = vmatprep.mubr.bf16.mxu0 0
        %1262 = vmatmul.mubr.bf16.gmra.mrb[0].mxu0 %v409
        %v1263 = vpop.f32.mrb[0].mxu0
        %v1264 = vadd.f32 0.0, %v1263
        %v1265 = vpop.f32.mrb[0].mxu0
        %v1266 = vpop.f32.mrb[0].mxu0
        %v1267 = vadd.f32 0.0, %v1266
        %v1268 = vpop.f32.mrb[0].mxu0
        %1269 = vmatprep.mubr.bf16.mxu0 0
        %1270 = vmatmul.mubr.bf16.gmra.mrb[0].mxu0 %v412
        %v1271 = vpop.f32.mrb[0].mxu0
        %v1272 = vadd.f32 0.0, %v1271
        %v1273 = vpop.f32.mrb[0].mxu0
        %v1274 = vpop.f32.mrb[0].mxu0
        %v1275 = vadd.f32 0.0, %v1274
        %v1276 = vpop.f32.mrb[0].mxu0
        %1277 = vmatprep.mubr.bf16.mxu0 0
        %1278 = vmatmul.mubr.bf16.gmra.mrb[0].mxu0 %v415
        %v1279 = vpop.f32.mrb[0].mxu0
        %v1280 = vadd.f32 0.0, %v1279
        %v1281 = vpop.f32.mrb[0].mxu0
        %v1282 = vpop.f32.mrb[0].mxu0
        %v1283 = vadd.f32 0.0, %v1282
        %v1284 = vpop.f32.mrb[0].mxu0
        %1285 = vdwg.mxu0
        %v1286 = vpack.c.bf16 %v1163, %v1160
        %v1287 = vpack.c.bf16 %v1171, %v1168
        %v1288 = vpack.c.bf16 %v1179, %v1176
        %v1289 = vpack.c.bf16 %v1187, %v1184
        %v1290 = vpack.c.bf16 %v1195, %v1192
        %v1291 = vpack.c.bf16 %v1203, %v1200
        %v1292 = vpack.c.bf16 %v1211, %v1208
        %v1293 = vpack.c.bf16 %v1219, %v1216
        %v1294 = vpack.c.bf16 %v1227, %v1224
        %v1295 = vpack.c.bf16 %v1235, %v1232
        %v1296 = vpack.c.bf16 %v1243, %v1240
        %v1297 = vpack.c.bf16 %v1251, %v1248
        %v1298 = vpack.c.bf16 %v1259, %v1256
        %v1299 = vpack.c.bf16 %v1267, %v1264
        %v1300 = vpack.c.bf16 %v1275, %v1272
        %v1301 = vpack.c.bf16 %v1283, %v1280
        %v1318 = vunpack.c.l.b16 %v1286
        %v1319 = vunpack.c.h.b16 %v1286
        %v1320 = vunpack.c.l.b16 %v1287
        %v1321 = vunpack.c.h.b16 %v1287
        %v1322 = vunpack.c.l.b16 %v1288
        %v1323 = vunpack.c.h.b16 %v1288
        %v1324 = vunpack.c.l.b16 %v1289
        %v1325 = vunpack.c.h.b16 %v1289
        %v1326 = vunpack.c.l.b16 %v1290
        %v1327 = vunpack.c.h.b16 %v1290
        %v1328 = vunpack.c.l.b16 %v1291
        %v1329 = vunpack.c.h.b16 %v1291
        %v1330 = vunpack.c.l.b16 %v1292
        %v1331 = vunpack.c.h.b16 %v1292
        %v1332 = vunpack.c.l.b16 %v1293
        %v1333 = vunpack.c.h.b16 %v1293
        %v1334 = vunpack.c.l.b16 %v1294
        %v1335 = vunpack.c.h.b16 %v1294
        %v1336 = vunpack.c.l.b16 %v1295
        %v1337 = vunpack.c.h.b16 %v1295
        %v1338 = vunpack.c.l.b16 %v1296
        %v1339 = vunpack.c.h.b16 %v1296
        %v1340 = vunpack.c.l.b16 %v1297
        %v1341 = vunpack.c.h.b16 %v1297
        %v1342 = vunpack.c.l.b16 %v1298
        %v1343 = vunpack.c.h.b16 %v1298
        %v1344 = vunpack.c.l.b16 %v1299
        %v1345 = vunpack.c.h.b16 %v1299
        %v1346 = vunpack.c.l.b16 %v1300
        %v1347 = vunpack.c.h.b16 %v1300
        %v1348 = vunpack.c.l.b16 %v1301
        %v1349 = vunpack.c.h.b16 %v1301
        %v1350 = vpack.c.b16 %v1318, %v1318
        %v1351 = vpack.c.b16 %v1319, %v1319
        %v1352 = vpack.c.b16 %v1320, %v1320
        %v1353 = vpack.c.b16 %v1321, %v1321
        %v1354 = vpack.c.b16 %v1322, %v1322
        %v1355 = vpack.c.b16 %v1323, %v1323
        %v1356 = vpack.c.b16 %v1324, %v1324
        %v1357 = vpack.c.b16 %v1325, %v1325
        %v1358 = vpack.c.b16 %v1326, %v1326
        %v1359 = vpack.c.b16 %v1327, %v1327
        %v1360 = vpack.c.b16 %v1328, %v1328
        %v1361 = vpack.c.b16 %v1329, %v1329
        %v1362 = vpack.c.b16 %v1330, %v1330
        %v1363 = vpack.c.b16 %v1331, %v1331
        %v1364 = vpack.c.b16 %v1332, %v1332
        %v1365 = vpack.c.b16 %v1333, %v1333
        %v1366 = vpack.c.b16 %v1334, %v1334
        %v1367 = vpack.c.b16 %v1335, %v1335
        %v1368 = vpack.c.b16 %v1336, %v1336
        %v1369 = vpack.c.b16 %v1337, %v1337
        %v1370 = vpack.c.b16 %v1338, %v1338
        %v1371 = vpack.c.b16 %v1339, %v1339
        %v1372 = vpack.c.b16 %v1340, %v1340
        %v1373 = vpack.c.b16 %v1341, %v1341
        %v1374 = vpack.c.b16 %v1342, %v1342
        %v1375 = vpack.c.b16 %v1343, %v1343
        %v1376 = vpack.c.b16 %v1344, %v1344
        %v1377 = vpack.c.b16 %v1345, %v1345
        %v1378 = vpack.c.b16 %v1346, %v1346
        %v1379 = vpack.c.b16 %v1347, %v1347
        %v1380 = vpack.c.b16 %v1348, %v1348
        %v1381 = vpack.c.b16 %v1349, %v1349
        %s1414 = scalar_lea.vmem %s211, 256 [#allocation2]
        %1415 = vst.msk [vmem:[%s1414] sm:$0xf] %vm706, %v1350
        %1416 = vst.msk [vmem:[%s1414 + $0x4] sm:$0xf] %vm706, %v1351
        %1417 = vst.msk [vmem:[%s1414 + $0x8] sm:$0xf] %vm706, %v1352
        %1418 = vst.msk [vmem:[%s1414 + $0xc] sm:$0xf] %vm706, %v1353
        %1419 = vst.msk [vmem:[%s1414 + $0x10] sm:$0xf] %vm706, %v1354
        %1420 = vst.msk [vmem:[%s1414 + $0x14] sm:$0xf] %vm706, %v1355
        %1421 = vst.msk [vmem:[%s1414 + $0x18] sm:$0xf] %vm706, %v1356
        %1422 = vst.msk [vmem:[%s1414 + $0x1c] sm:$0xf] %vm706, %v1357
        %1423 = vst.msk [vmem:[%s1414 + $0x20] sm:$0xf] %vm706, %v1358
        %1424 = vst.msk [vmem:[%s1414 + $0x24] sm:$0xf] %vm706, %v1359
        %1425 = vst.msk [vmem:[%s1414 + $0x28] sm:$0xf] %vm706, %v1360
        %1426 = vst.msk [vmem:[%s1414 + $0x2c] sm:$0xf] %vm706, %v1361
        %1427 = vst.msk [vmem:[%s1414 + $0x30] sm:$0xf] %vm706, %v1362
        %1428 = vst.msk [vmem:[%s1414 + $0x34] sm:$0xf] %vm706, %v1363
        %1429 = vst.msk [vmem:[%s1414 + $0x38] sm:$0xf] %vm706, %v1364
        %1430 = vst.msk [vmem:[%s1414 + $0x3c] sm:$0xf] %vm706, %v1365
        %1431 = vst.msk [vmem:[%s1414 + $0x40] sm:$0xf] %vm706, %v1366
        %1432 = vst.msk [vmem:[%s1414 + $0x44] sm:$0xf] %vm706, %v1367
        %1433 = vst.msk [vmem:[%s1414 + $0x48] sm:$0xf] %vm706, %v1368
        %1434 = vst.msk [vmem:[%s1414 + $0x4c] sm:$0xf] %vm706, %v1369
        %1435 = vst.msk [vmem:[%s1414 + $0x50] sm:$0xf] %vm706, %v1370
        %1436 = vst.msk [vmem:[%s1414 + $0x54] sm:$0xf] %vm706, %v1371
        %1437 = vst.msk [vmem:[%s1414 + $0x58] sm:$0xf] %vm706, %v1372
        %1438 = vst.msk [vmem:[%s1414 + $0x5c] sm:$0xf] %vm706, %v1373
        %1439 = vst.msk [vmem:[%s1414 + $0x60] sm:$0xf] %vm706, %v1374
        %1440 = vst.msk [vmem:[%s1414 + $0x64] sm:$0xf] %vm706, %v1375
        %1441 = vst.msk [vmem:[%s1414 + $0x68] sm:$0xf] %vm706, %v1376
        %1442 = vst.msk [vmem:[%s1414 + $0x6c] sm:$0xf] %vm706, %v1377
        %1443 = vst.msk [vmem:[%s1414 + $0x70] sm:$0xf] %vm706, %v1378
        %1444 = vst.msk [vmem:[%s1414 + $0x74] sm:$0xf] %vm706, %v1379
        %1445 = vst.msk [vmem:[%s1414 + $0x78] sm:$0xf] %vm706, %v1380
        %1446 = vst.msk [vmem:[%s1414 + $0x7c] sm:$0xf] %vm706, %v1381
        %s1447 = sand.u32 %s128, 1
        %s1448 = sand.u32 %s128, 1
        %s1449 = smul.addr %s1448, 384
        %s1450 = scalar_lea.vmem [#allocation2], %s1449
        // Predicated region
        $region37: #{tpu_custom_call.1} parent=35 // pred_check
          %p1451 = pneg %p138
        $region38: #{tpu_custom_call.1} parent=35 // pred_check_branch
          %1453 = sbr.rel (%p1451) target = $region40
        $region39: #{tpu_custom_call.1} parent=35 // pred_region
          %s1454 = smul.u32 32, %s20
          %s1455 = smul.addr %s19, 64
          %s1456 = sadd.s32 %s1454, %s1455
          %s1457 = smul.addr %s1456, 4
          %s1458 = scalar_lea.vmem %s4, %s1457
          // Predicated region
          $region41: #{tpu_custom_call.1} parent=39 // pred_check
            _
          $region42: #{tpu_custom_call.1} parent=39 // pred_check_branch
            %1460 = sbr.rel (0) target = $region44
          $region43: #{tpu_custom_call.1} parent=39 // pred_region
            // Predicated region
            $region45: #{tpu_custom_call.1} parent=43 // pred_check
              _
            $region46: #{tpu_custom_call.1} parent=43 // pred_check_branch
              %1462 = sbr.rel target = $region48
            $region47: #{tpu_custom_call.1} parent=43 // pred_region
              // Predicated region
              $region60: #{tpu_custom_call.1} parent=47 // pred_check
                _
              $region61: #{tpu_custom_call.1} parent=47 // pred_check_branch
                %1667 = sbr.rel (0) target = $region63
              $region62: #{tpu_custom_call.1} parent=47 // pred_region
                loop: start=0, step=1, limit=1
                $region64: #{tpu_custom_call.1} parent=62 // loop_pre_header
                  _
                $region65: #{tpu_custom_call.1} parent=62 // loop_header
                  %s1669 = sphi 0, %s1673
                  %p1670 = scmp.ge.s32.totalorder %s1669, 1
                  %s1674 = sphi %s1450, %s1450
                  %s1675 = sphi %s1458, %s1458
                $region66: #{tpu_custom_call.1} parent=62 // loop_header_branch
                  %1672 = sbr.rel (%p1670) target = $region70
                $region67: #{tpu_custom_call.1} parent=62 // loop_body
                  _
                $region68: #{tpu_custom_call.1} parent=62 // loop_footer
                  %s1673 = sadd.s32 1, %s1669
                $region69: #{tpu_custom_call.1} parent=62 // loop_footer_branch
                  %1668 = sbr.rel target = $region65
                $region70: #{tpu_custom_call.1} parent=62 // loop_exit
                  _
                loop: start=0, step=1, limit=1
                $region71: #{tpu_custom_call.1} parent=62 // loop_pre_header
                  _
                $region72: #{tpu_custom_call.1} parent=62 // loop_header
                  %s1678 = sphi 0, %s1682
                  %p1679 = scmp.ge.s32.totalorder %s1678, 1
                  %s1683 = sphi %s1450, %s1450
                  %s1684 = sphi %s1458, %s1458
                $region73: #{tpu_custom_call.1} parent=62 // loop_header_branch
                  %1681 = sbr.rel (%p1679) target = $region77
                $region74: #{tpu_custom_call.1} parent=62 // loop_body
                  %v1685 = vld [vmem:[%s1683] sm:$0xf]
                  %1686 = vst [vmem:[%s1684] sm:$0xf] %v1685
                  %v1687 = vld [vmem:[%s1683 + $0x4] sm:$0xf]
                  %1688 = vst [vmem:[%s1684 + $0x4] sm:$0xf] %v1687
                  %v1689 = vld [vmem:[%s1683 + $0x8] sm:$0xf]
                  %1690 = vst [vmem:[%s1684 + $0x8] sm:$0xf] %v1689
                  %v1691 = vld [vmem:[%s1683 + $0xc] sm:$0xf]
                  %1692 = vst [vmem:[%s1684 + $0xc] sm:$0xf] %v1691
                  %v1693 = vld [vmem:[%s1683 + $0x10] sm:$0xf]
                  %1694 = vst [vmem:[%s1684 + $0x10] sm:$0xf] %v1693
                  %v1695 = vld [vmem:[%s1683 + $0x14] sm:$0xf]
                  %1696 = vst [vmem:[%s1684 + $0x14] sm:$0xf] %v1695
                  %v1697 = vld [vmem:[%s1683 + $0x18] sm:$0xf]
                  %1698 = vst [vmem:[%s1684 + $0x18] sm:$0xf] %v1697
                  %v1699 = vld [vmem:[%s1683 + $0x1c] sm:$0xf]
                  %1700 = vst [vmem:[%s1684 + $0x1c] sm:$0xf] %v1699
                  %v1701 = vld [vmem:[%s1683 + $0x20] sm:$0xf]
                  %1702 = vst [vmem:[%s1684 + $0x20] sm:$0xf] %v1701
                  %v1703 = vld [vmem:[%s1683 + $0x24] sm:$0xf]
                  %1704 = vst [vmem:[%s1684 + $0x24] sm:$0xf] %v1703
                  %v1705 = vld [vmem:[%s1683 + $0x28] sm:$0xf]
                  %1706 = vst [vmem:[%s1684 + $0x28] sm:$0xf] %v1705
                  %v1707 = vld [vmem:[%s1683 + $0x2c] sm:$0xf]
                  %1708 = vst [vmem:[%s1684 + $0x2c] sm:$0xf] %v1707
                  %v1709 = vld [vmem:[%s1683 + $0x30] sm:$0xf]
                  %1710 = vst [vmem:[%s1684 + $0x30] sm:$0xf] %v1709
                  %v1711 = vld [vmem:[%s1683 + $0x34] sm:$0xf]
                  %1712 = vst [vmem:[%s1684 + $0x34] sm:$0xf] %v1711
                  %v1713 = vld [vmem:[%s1683 + $0x38] sm:$0xf]
                  %1714 = vst [vmem:[%s1684 + $0x38] sm:$0xf] %v1713
                  %v1715 = vld [vmem:[%s1683 + $0x3c] sm:$0xf]
                  %1716 = vst [vmem:[%s1684 + $0x3c] sm:$0xf] %v1715
                  %v1717 = vld [vmem:[%s1683 + $0x40] sm:$0xf]
                  %1718 = vst [vmem:[%s1684 + $0x40] sm:$0xf] %v1717
                  %v1719 = vld [vmem:[%s1683 + $0x44] sm:$0xf]
                  %1720 = vst [vmem:[%s1684 + $0x44] sm:$0xf] %v1719
                  %v1721 = vld [vmem:[%s1683 + $0x48] sm:$0xf]
                  %1722 = vst [vmem:[%s1684 + $0x48] sm:$0xf] %v1721
                  %v1723 = vld [vmem:[%s1683 + $0x4c] sm:$0xf]
                  %1724 = vst [vmem:[%s1684 + $0x4c] sm:$0xf] %v1723
                  %v1725 = vld [vmem:[%s1683 + $0x50] sm:$0xf]
                  %1726 = vst [vmem:[%s1684 + $0x50] sm:$0xf] %v1725
                  %v1727 = vld [vmem:[%s1683 + $0x54] sm:$0xf]
                  %1728 = vst [vmem:[%s1684 + $0x54] sm:$0xf] %v1727
                  %v1729 = vld [vmem:[%s1683 + $0x58] sm:$0xf]
                  %1730 = vst [vmem:[%s1684 + $0x58] sm:$0xf] %v1729
                  %v1731 = vld [vmem:[%s1683 + $0x5c] sm:$0xf]
                  %1732 = vst [vmem:[%s1684 + $0x5c] sm:$0xf] %v1731
                  %v1733 = vld [vmem:[%s1683 + $0x60] sm:$0xf]
                  %1734 = vst [vmem:[%s1684 + $0x60] sm:$0xf] %v1733
                  %v1735 = vld [vmem:[%s1683 + $0x64] sm:$0xf]
                  %1736 = vst [vmem:[%s1684 + $0x64] sm:$0xf] %v1735
                  %v1737 = vld [vmem:[%s1683 + $0x68] sm:$0xf]
                  %1738 = vst [vmem:[%s1684 + $0x68] sm:$0xf] %v1737
                  %v1739 = vld [vmem:[%s1683 + $0x6c] sm:$0xf]
                  %1740 = vst [vmem:[%s1684 + $0x6c] sm:$0xf] %v1739
                  %v1741 = vld [vmem:[%s1683 + $0x70] sm:$0xf]
                  %1742 = vst [vmem:[%s1684 + $0x70] sm:$0xf] %v1741
                  %v1743 = vld [vmem:[%s1683 + $0x74] sm:$0xf]
                  %1744 = vst [vmem:[%s1684 + $0x74] sm:$0xf] %v1743
                  %v1745 = vld [vmem:[%s1683 + $0x78] sm:$0xf]
                  %1746 = vst [vmem:[%s1684 + $0x78] sm:$0xf] %v1745
                  %v1747 = vld [vmem:[%s1683 + $0x7c] sm:$0xf]
                  %1748 = vst [vmem:[%s1684 + $0x7c] sm:$0xf] %v1747
                  %v1749 = vld [vmem:[%s1683 + $0x80] sm:$0xf]
                  %1750 = vst [vmem:[%s1684 + $0x200] sm:$0xf] %v1749
                  %v1751 = vld [vmem:[%s1683 + $0x84] sm:$0xf]
                  %1752 = vst [vmem:[%s1684 + $0x204] sm:$0xf] %v1751
                  %v1753 = vld [vmem:[%s1683 + $0x88] sm:$0xf]
                  %1754 = vst [vmem:[%s1684 + $0x208] sm:$0xf] %v1753
                  %v1755 = vld [vmem:[%s1683 + $0x8c] sm:$0xf]
                  %1756 = vst [vmem:[%s1684 + $0x20c] sm:$0xf] %v1755
                  %v1757 = vld [vmem:[%s1683 + $0x90] sm:$0xf]
                  %1758 = vst [vmem:[%s1684 + $0x210] sm:$0xf] %v1757
                  %v1759 = vld [vmem:[%s1683 + $0x94] sm:$0xf]
                  %1760 = vst [vmem:[%s1684 + $0x214] sm:$0xf] %v1759
                  %v1761 = vld [vmem:[%s1683 + $0x98] sm:$0xf]
                  %1762 = vst [vmem:[%s1684 + $0x218] sm:$0xf] %v1761
                  %v1763 = vld [vmem:[%s1683 + $0x9c] sm:$0xf]
                  %1764 = vst [vmem:[%s1684 + $0x21c] sm:$0xf] %v1763
                  %v1765 = vld [vmem:[%s1683 + $0xa0] sm:$0xf]
                  %1766 = vst [vmem:[%s1684 + $0x220] sm:$0xf] %v1765
                  %v1767 = vld [vmem:[%s1683 + $0xa4] sm:$0xf]
                  %1768 = vst [vmem:[%s1684 + $0x224] sm:$0xf] %v1767
                  %v1769 = vld [vmem:[%s1683 + $0xa8] sm:$0xf]
                  %1770 = vst [vmem:[%s1684 + $0x228] sm:$0xf] %v1769
                  %v1771 = vld [vmem:[%s1683 + $0xac] sm:$0xf]
                  %1772 = vst [vmem:[%s1684 + $0x22c] sm:$0xf] %v1771
                  %v1773 = vld [vmem:[%s1683 + $0xb0] sm:$0xf]
                  %1774 = vst [vmem:[%s1684 + $0x230] sm:$0xf] %v1773
                  %v1775 = vld [vmem:[%s1683 + $0xb4] sm:$0xf]
                  %1776 = vst [vmem:[%s1684 + $0x234] sm:$0xf] %v1775
                  %v1777 = vld [vmem:[%s1683 + $0xb8] sm:$0xf]
                  %1778 = vst [vmem:[%s1684 + $0x238] sm:$0xf] %v1777
                  %v1779 = vld [vmem:[%s1683 + $0xbc] sm:$0xf]
                  %1780 = vst [vmem:[%s1684 + $0x23c] sm:$0xf] %v1779
                  %v1781 = vld [vmem:[%s1683 + $0xc0] sm:$0xf]
                  %1782 = vst [vmem:[%s1684 + $0x240] sm:$0xf] %v1781
                  %v1783 = vld [vmem:[%s1683 + $0xc4] sm:$0xf]
                  %1784 = vst [vmem:[%s1684 + $0x244] sm:$0xf] %v1783
                  %v1785 = vld [vmem:[%s1683 + $0xc8] sm:$0xf]
                  %1786 = vst [vmem:[%s1684 + $0x248] sm:$0xf] %v1785
                  %v1787 = vld [vmem:[%s1683 + $0xcc] sm:$0xf]
                  %1788 = vst [vmem:[%s1684 + $0x24c] sm:$0xf] %v1787
                  %v1789 = vld [vmem:[%s1683 + $0xd0] sm:$0xf]
                  %1790 = vst [vmem:[%s1684 + $0x250] sm:$0xf] %v1789
                  %v1791 = vld [vmem:[%s1683 + $0xd4] sm:$0xf]
                  %1792 = vst [vmem:[%s1684 + $0x254] sm:$0xf] %v1791
                  %v1793 = vld [vmem:[%s1683 + $0xd8] sm:$0xf]
                  %1794 = vst [vmem:[%s1684 + $0x258] sm:$0xf] %v1793
                  %v1795 = vld [vmem:[%s1683 + $0xdc] sm:$0xf]
                  %1796 = vst [vmem:[%s1684 + $0x25c] sm:$0xf] %v1795
                  %v1797 = vld [vmem:[%s1683 + $0xe0] sm:$0xf]
                  %1798 = vst [vmem:[%s1684 + $0x260] sm:$0xf] %v1797
                  %v1799 = vld [vmem:[%s1683 + $0xe4] sm:$0xf]
                  %1800 = vst [vmem:[%s1684 + $0x264] sm:$0xf] %v1799
                  %v1801 = vld [vmem:[%s1683 + $0xe8] sm:$0xf]
                  %1802 = vst [vmem:[%s1684 + $0x268] sm:$0xf] %v1801
                  %v1803 = vld [vmem:[%s1683 + $0xec] sm:$0xf]
                  %1804 = vst [vmem:[%s1684 + $0x26c] sm:$0xf] %v1803
                  %v1805 = vld [vmem:[%s1683 + $0xf0] sm:$0xf]
                  %1806 = vst [vmem:[%s1684 + $0x270] sm:$0xf] %v1805
                  %v1807 = vld [vmem:[%s1683 + $0xf4] sm:$0xf]
                  %1808 = vst [vmem:[%s1684 + $0x274] sm:$0xf] %v1807
                  %v1809 = vld [vmem:[%s1683 + $0xf8] sm:$0xf]
                  %1810 = vst [vmem:[%s1684 + $0x278] sm:$0xf] %v1809
                  %v1811 = vld [vmem:[%s1683 + $0xfc] sm:$0xf]
                  %1812 = vst [vmem:[%s1684 + $0x27c] sm:$0xf] %v1811
                  %v1813 = vld [vmem:[%s1683 + $0x100] sm:$0xf]
                  %1814 = vst [vmem:[%s1684 + $0x400] sm:$0xf] %v1813
                  %v1815 = vld [vmem:[%s1683 + $0x104] sm:$0xf]
                  %1816 = vst [vmem:[%s1684 + $0x404] sm:$0xf] %v1815
                  %v1817 = vld [vmem:[%s1683 + $0x108] sm:$0xf]
                  %1818 = vst [vmem:[%s1684 + $0x408] sm:$0xf] %v1817
                  %v1819 = vld [vmem:[%s1683 + $0x10c] sm:$0xf]
                  %1820 = vst [vmem:[%s1684 + $0x40c] sm:$0xf] %v1819
                  %v1821 = vld [vmem:[%s1683 + $0x110] sm:$0xf]
                  %1822 = vst [vmem:[%s1684 + $0x410] sm:$0xf] %v1821
                  %v1823 = vld [vmem:[%s1683 + $0x114] sm:$0xf]
                  %1824 = vst [vmem:[%s1684 + $0x414] sm:$0xf] %v1823
                  %v1825 = vld [vmem:[%s1683 + $0x118] sm:$0xf]
                  %1826 = vst [vmem:[%s1684 + $0x418] sm:$0xf] %v1825
                  %v1827 = vld [vmem:[%s1683 + $0x11c] sm:$0xf]
                  %1828 = vst [vmem:[%s1684 + $0x41c] sm:$0xf] %v1827
                  %v1829 = vld [vmem:[%s1683 + $0x120] sm:$0xf]
                  %1830 = vst [vmem:[%s1684 + $0x420] sm:$0xf] %v1829
                  %v1831 = vld [vmem:[%s1683 + $0x124] sm:$0xf]
                  %1832 = vst [vmem:[%s1684 + $0x424] sm:$0xf] %v1831
                  %v1833 = vld [vmem:[%s1683 + $0x128] sm:$0xf]
                  %1834 = vst [vmem:[%s1684 + $0x428] sm:$0xf] %v1833
                  %v1835 = vld [vmem:[%s1683 + $0x12c] sm:$0xf]
                  %1836 = vst [vmem:[%s1684 + $0x42c] sm:$0xf] %v1835
                  %v1837 = vld [vmem:[%s1683 + $0x130] sm:$0xf]
                  %1838 = vst [vmem:[%s1684 + $0x430] sm:$0xf] %v1837
                  %v1839 = vld [vmem:[%s1683 + $0x134] sm:$0xf]
                  %1840 = vst [vmem:[%s1684 + $0x434] sm:$0xf] %v1839
                  %v1841 = vld [vmem:[%s1683 + $0x138] sm:$0xf]
                  %1842 = vst [vmem:[%s1684 + $0x438] sm:$0xf] %v1841
                  %v1843 = vld [vmem:[%s1683 + $0x13c] sm:$0xf]
                  %1844 = vst [vmem:[%s1684 + $0x43c] sm:$0xf] %v1843
                  %v1845 = vld [vmem:[%s1683 + $0x140] sm:$0xf]
                  %1846 = vst [vmem:[%s1684 + $0x440] sm:$0xf] %v1845
                  %v1847 = vld [vmem:[%s1683 + $0x144] sm:$0xf]
                  %1848 = vst [vmem:[%s1684 + $0x444] sm:$0xf] %v1847
                  %v1849 = vld [vmem:[%s1683 + $0x148] sm:$0xf]
                  %1850 = vst [vmem:[%s1684 + $0x448] sm:$0xf] %v1849
                  %v1851 = vld [vmem:[%s1683 + $0x14c] sm:$0xf]
                  %1852 = vst [vmem:[%s1684 + $0x44c] sm:$0xf] %v1851
                  %v1853 = vld [vmem:[%s1683 + $0x150] sm:$0xf]
                  %1854 = vst [vmem:[%s1684 + $0x450] sm:$0xf] %v1853
                  %v1855 = vld [vmem:[%s1683 + $0x154] sm:$0xf]
                  %1856 = vst [vmem:[%s1684 + $0x454] sm:$0xf] %v1855
                  %v1857 = vld [vmem:[%s1683 + $0x158] sm:$0xf]
                  %1858 = vst [vmem:[%s1684 + $0x458] sm:$0xf] %v1857
                  %v1859 = vld [vmem:[%s1683 + $0x15c] sm:$0xf]
                  %1860 = vst [vmem:[%s1684 + $0x45c] sm:$0xf] %v1859
                  %v1861 = vld [vmem:[%s1683 + $0x160] sm:$0xf]
                  %1862 = vst [vmem:[%s1684 + $0x460] sm:$0xf] %v1861
                  %v1863 = vld [vmem:[%s1683 + $0x164] sm:$0xf]
                  %1864 = vst [vmem:[%s1684 + $0x464] sm:$0xf] %v1863
                  %v1865 = vld [vmem:[%s1683 + $0x168] sm:$0xf]
                  %1866 = vst [vmem:[%s1684 + $0x468] sm:$0xf] %v1865
                  %v1867 = vld [vmem:[%s1683 + $0x16c] sm:$0xf]
                  %1868 = vst [vmem:[%s1684 + $0x46c] sm:$0xf] %v1867
                  %v1869 = vld [vmem:[%s1683 + $0x170] sm:$0xf]
                  %1870 = vst [vmem:[%s1684 + $0x470] sm:$0xf] %v1869
                  %v1871 = vld [vmem:[%s1683 + $0x174] sm:$0xf]
                  %1872 = vst [vmem:[%s1684 + $0x474] sm:$0xf] %v1871
                  %v1873 = vld [vmem:[%s1683 + $0x178] sm:$0xf]
                  %1874 = vst [vmem:[%s1684 + $0x478] sm:$0xf] %v1873
                  %v1875 = vld [vmem:[%s1683 + $0x17c] sm:$0xf]
                  %1876 = vst [vmem:[%s1684 + $0x47c] sm:$0xf] %v1875
                $region75: #{tpu_custom_call.1} parent=62 // loop_footer
                  %s1682 = sadd.s32 1, %s1678
                $region76: #{tpu_custom_call.1} parent=62 // loop_footer_branch
                  %1677 = sbr.rel target = $region72
                $region77: #{tpu_custom_call.1} parent=62 // loop_exit
                  _
              $region63: #{tpu_custom_call.1} parent=47 // pred_fallthru
                _
            $region48: #{tpu_custom_call.1} parent=43 // pred_fallthru
              _
            // Predicated region
            $region49: #{tpu_custom_call.1} parent=43 // pred_check
              _
            $region50: #{tpu_custom_call.1} parent=43 // pred_check_branch
              %1464 = sbr.rel (0) target = $region52
            $region51: #{tpu_custom_call.1} parent=43 // pred_region
              loop: start=0, step=1, limit=1
              $region53: #{tpu_custom_call.1} parent=51 // loop_pre_header
                _
              $region54: #{tpu_custom_call.1} parent=51 // loop_header
                %s1467 = sphi 0, %s1471
                %p1468 = scmp.ge.s32.totalorder %s1467, 1
                %s1472 = sphi %s1450, %s1450
                %s1473 = sphi %s1458, %s1458
              $region55: #{tpu_custom_call.1} parent=51 // loop_header_branch
                %1470 = sbr.rel (%p1468) target = $region59
              $region56: #{tpu_custom_call.1} parent=51 // loop_body
                %v1474 = vld [vmem:[%s1472] sm:$0xf]
                %1475 = vst [vmem:[%s1473] sm:$0xf] %v1474
                %v1476 = vld [vmem:[%s1472 + $0x4] sm:$0xf]
                %1477 = vst [vmem:[%s1473 + $0x4] sm:$0xf] %v1476
                %v1478 = vld [vmem:[%s1472 + $0x8] sm:$0xf]
                %1479 = vst [vmem:[%s1473 + $0x8] sm:$0xf] %v1478
                %v1480 = vld [vmem:[%s1472 + $0xc] sm:$0xf]
                %1481 = vst [vmem:[%s1473 + $0xc] sm:$0xf] %v1480
                %v1482 = vld [vmem:[%s1472 + $0x10] sm:$0xf]
                %1483 = vst [vmem:[%s1473 + $0x10] sm:$0xf] %v1482
                %v1484 = vld [vmem:[%s1472 + $0x14] sm:$0xf]
                %1485 = vst [vmem:[%s1473 + $0x14] sm:$0xf] %v1484
                %v1486 = vld [vmem:[%s1472 + $0x18] sm:$0xf]
                %1487 = vst [vmem:[%s1473 + $0x18] sm:$0xf] %v1486
                %v1488 = vld [vmem:[%s1472 + $0x1c] sm:$0xf]
                %1489 = vst [vmem:[%s1473 + $0x1c] sm:$0xf] %v1488
                %v1490 = vld [vmem:[%s1472 + $0x20] sm:$0xf]
                %1491 = vst [vmem:[%s1473 + $0x20] sm:$0xf] %v1490
                %v1492 = vld [vmem:[%s1472 + $0x24] sm:$0xf]
                %1493 = vst [vmem:[%s1473 + $0x24] sm:$0xf] %v1492
                %v1494 = vld [vmem:[%s1472 + $0x28] sm:$0xf]
                %1495 = vst [vmem:[%s1473 + $0x28] sm:$0xf] %v1494
                %v1496 = vld [vmem:[%s1472 + $0x2c] sm:$0xf]
                %1497 = vst [vmem:[%s1473 + $0x2c] sm:$0xf] %v1496
                %v1498 = vld [vmem:[%s1472 + $0x30] sm:$0xf]
                %1499 = vst [vmem:[%s1473 + $0x30] sm:$0xf] %v1498
                %v1500 = vld [vmem:[%s1472 + $0x34] sm:$0xf]
                %1501 = vst [vmem:[%s1473 + $0x34] sm:$0xf] %v1500
                %v1502 = vld [vmem:[%s1472 + $0x38] sm:$0xf]
                %1503 = vst [vmem:[%s1473 + $0x38] sm:$0xf] %v1502
                %v1504 = vld [vmem:[%s1472 + $0x3c] sm:$0xf]
                %1505 = vst [vmem:[%s1473 + $0x3c] sm:$0xf] %v1504
                %v1506 = vld [vmem:[%s1472 + $0x40] sm:$0xf]
                %1507 = vst [vmem:[%s1473 + $0x40] sm:$0xf] %v1506
                %v1508 = vld [vmem:[%s1472 + $0x44] sm:$0xf]
                %1509 = vst [vmem:[%s1473 + $0x44] sm:$0xf] %v1508
                %v1510 = vld [vmem:[%s1472 + $0x48] sm:$0xf]
                %1511 = vst [vmem:[%s1473 + $0x48] sm:$0xf] %v1510
                %v1512 = vld [vmem:[%s1472 + $0x4c] sm:$0xf]
                %1513 = vst [vmem:[%s1473 + $0x4c] sm:$0xf] %v1512
                %v1514 = vld [vmem:[%s1472 + $0x50] sm:$0xf]
                %1515 = vst [vmem:[%s1473 + $0x50] sm:$0xf] %v1514
                %v1516 = vld [vmem:[%s1472 + $0x54] sm:$0xf]
                %1517 = vst [vmem:[%s1473 + $0x54] sm:$0xf] %v1516
                %v1518 = vld [vmem:[%s1472 + $0x58] sm:$0xf]
                %1519 = vst [vmem:[%s1473 + $0x58] sm:$0xf] %v1518
                %v1520 = vld [vmem:[%s1472 + $0x5c] sm:$0xf]
                %1521 = vst [vmem:[%s1473 + $0x5c] sm:$0xf] %v1520
                %v1522 = vld [vmem:[%s1472 + $0x60] sm:$0xf]
                %1523 = vst [vmem:[%s1473 + $0x60] sm:$0xf] %v1522
                %v1524 = vld [vmem:[%s1472 + $0x64] sm:$0xf]
                %1525 = vst [vmem:[%s1473 + $0x64] sm:$0xf] %v1524
                %v1526 = vld [vmem:[%s1472 + $0x68] sm:$0xf]
                %1527 = vst [vmem:[%s1473 + $0x68] sm:$0xf] %v1526
                %v1528 = vld [vmem:[%s1472 + $0x6c] sm:$0xf]
                %1529 = vst [vmem:[%s1473 + $0x6c] sm:$0xf] %v1528
                %v1530 = vld [vmem:[%s1472 + $0x70] sm:$0xf]
                %1531 = vst [vmem:[%s1473 + $0x70] sm:$0xf] %v1530
                %v1532 = vld [vmem:[%s1472 + $0x74] sm:$0xf]
                %1533 = vst [vmem:[%s1473 + $0x74] sm:$0xf] %v1532
                %v1534 = vld [vmem:[%s1472 + $0x78] sm:$0xf]
                %1535 = vst [vmem:[%s1473 + $0x78] sm:$0xf] %v1534
                %v1536 = vld [vmem:[%s1472 + $0x7c] sm:$0xf]
                %1537 = vst [vmem:[%s1473 + $0x7c] sm:$0xf] %v1536
                %v1538 = vld [vmem:[%s1472 + $0x80] sm:$0xf]
                %1539 = vst [vmem:[%s1473 + $0x200] sm:$0xf] %v1538
                %v1540 = vld [vmem:[%s1472 + $0x84] sm:$0xf]
                %1541 = vst [vmem:[%s1473 + $0x204] sm:$0xf] %v1540
                %v1542 = vld [vmem:[%s1472 + $0x88] sm:$0xf]
                %1543 = vst [vmem:[%s1473 + $0x208] sm:$0xf] %v1542
                %v1544 = vld [vmem:[%s1472 + $0x8c] sm:$0xf]
                %1545 = vst [vmem:[%s1473 + $0x20c] sm:$0xf] %v1544
                %v1546 = vld [vmem:[%s1472 + $0x90] sm:$0xf]
                %1547 = vst [vmem:[%s1473 + $0x210] sm:$0xf] %v1546
                %v1548 = vld [vmem:[%s1472 + $0x94] sm:$0xf]
                %1549 = vst [vmem:[%s1473 + $0x214] sm:$0xf] %v1548
                %v1550 = vld [vmem:[%s1472 + $0x98] sm:$0xf]
                %1551 = vst [vmem:[%s1473 + $0x218] sm:$0xf] %v1550
                %v1552 = vld [vmem:[%s1472 + $0x9c] sm:$0xf]
                %1553 = vst [vmem:[%s1473 + $0x21c] sm:$0xf] %v1552
                %v1554 = vld [vmem:[%s1472 + $0xa0] sm:$0xf]
                %1555 = vst [vmem:[%s1473 + $0x220] sm:$0xf] %v1554
                %v1556 = vld [vmem:[%s1472 + $0xa4] sm:$0xf]
                %1557 = vst [vmem:[%s1473 + $0x224] sm:$0xf] %v1556
                %v1558 = vld [vmem:[%s1472 + $0xa8] sm:$0xf]
                %1559 = vst [vmem:[%s1473 + $0x228] sm:$0xf] %v1558
                %v1560 = vld [vmem:[%s1472 + $0xac] sm:$0xf]
                %1561 = vst [vmem:[%s1473 + $0x22c] sm:$0xf] %v1560
                %v1562 = vld [vmem:[%s1472 + $0xb0] sm:$0xf]
                %1563 = vst [vmem:[%s1473 + $0x230] sm:$0xf] %v1562
                %v1564 = vld [vmem:[%s1472 + $0xb4] sm:$0xf]
                %1565 = vst [vmem:[%s1473 + $0x234] sm:$0xf] %v1564
                %v1566 = vld [vmem:[%s1472 + $0xb8] sm:$0xf]
                %1567 = vst [vmem:[%s1473 + $0x238] sm:$0xf] %v1566
                %v1568 = vld [vmem:[%s1472 + $0xbc] sm:$0xf]
                %1569 = vst [vmem:[%s1473 + $0x23c] sm:$0xf] %v1568
                %v1570 = vld [vmem:[%s1472 + $0xc0] sm:$0xf]
                %1571 = vst [vmem:[%s1473 + $0x240] sm:$0xf] %v1570
                %v1572 = vld [vmem:[%s1472 + $0xc4] sm:$0xf]
                %1573 = vst [vmem:[%s1473 + $0x244] sm:$0xf] %v1572
                %v1574 = vld [vmem:[%s1472 + $0xc8] sm:$0xf]
                %1575 = vst [vmem:[%s1473 + $0x248] sm:$0xf] %v1574
                %v1576 = vld [vmem:[%s1472 + $0xcc] sm:$0xf]
                %1577 = vst [vmem:[%s1473 + $0x24c] sm:$0xf] %v1576
                %v1578 = vld [vmem:[%s1472 + $0xd0] sm:$0xf]
                %1579 = vst [vmem:[%s1473 + $0x250] sm:$0xf] %v1578
                %v1580 = vld [vmem:[%s1472 + $0xd4] sm:$0xf]
                %1581 = vst [vmem:[%s1473 + $0x254] sm:$0xf] %v1580
                %v1582 = vld [vmem:[%s1472 + $0xd8] sm:$0xf]
                %1583 = vst [vmem:[%s1473 + $0x258] sm:$0xf] %v1582
                %v1584 = vld [vmem:[%s1472 + $0xdc] sm:$0xf]
                %1585 = vst [vmem:[%s1473 + $0x25c] sm:$0xf] %v1584
                %v1586 = vld [vmem:[%s1472 + $0xe0] sm:$0xf]
                %1587 = vst [vmem:[%s1473 + $0x260] sm:$0xf] %v1586
                %v1588 = vld [vmem:[%s1472 + $0xe4] sm:$0xf]
                %1589 = vst [vmem:[%s1473 + $0x264] sm:$0xf] %v1588
                %v1590 = vld [vmem:[%s1472 + $0xe8] sm:$0xf]
                %1591 = vst [vmem:[%s1473 + $0x268] sm:$0xf] %v1590
                %v1592 = vld [vmem:[%s1472 + $0xec] sm:$0xf]
                %1593 = vst [vmem:[%s1473 + $0x26c] sm:$0xf] %v1592
                %v1594 = vld [vmem:[%s1472 + $0xf0] sm:$0xf]
                %1595 = vst [vmem:[%s1473 + $0x270] sm:$0xf] %v1594
                %v1596 = vld [vmem:[%s1472 + $0xf4] sm:$0xf]
                %1597 = vst [vmem:[%s1473 + $0x274] sm:$0xf] %v1596
                %v1598 = vld [vmem:[%s1472 + $0xf8] sm:$0xf]
                %1599 = vst [vmem:[%s1473 + $0x278] sm:$0xf] %v1598
                %v1600 = vld [vmem:[%s1472 + $0xfc] sm:$0xf]
                %1601 = vst [vmem:[%s1473 + $0x27c] sm:$0xf] %v1600
                %v1602 = vld [vmem:[%s1472 + $0x100] sm:$0xf]
                %1603 = vst [vmem:[%s1473 + $0x400] sm:$0xf] %v1602
                %v1604 = vld [vmem:[%s1472 + $0x104] sm:$0xf]
                %1605 = vst [vmem:[%s1473 + $0x404] sm:$0xf] %v1604
                %v1606 = vld [vmem:[%s1472 + $0x108] sm:$0xf]
                %1607 = vst [vmem:[%s1473 + $0x408] sm:$0xf] %v1606
                %v1608 = vld [vmem:[%s1472 + $0x10c] sm:$0xf]
                %1609 = vst [vmem:[%s1473 + $0x40c] sm:$0xf] %v1608
                %v1610 = vld [vmem:[%s1472 + $0x110] sm:$0xf]
                %1611 = vst [vmem:[%s1473 + $0x410] sm:$0xf] %v1610
                %v1612 = vld [vmem:[%s1472 + $0x114] sm:$0xf]
                %1613 = vst [vmem:[%s1473 + $0x414] sm:$0xf] %v1612
                %v1614 = vld [vmem:[%s1472 + $0x118] sm:$0xf]
                %1615 = vst [vmem:[%s1473 + $0x418] sm:$0xf] %v1614
                %v1616 = vld [vmem:[%s1472 + $0x11c] sm:$0xf]
                %1617 = vst [vmem:[%s1473 + $0x41c] sm:$0xf] %v1616
                %v1618 = vld [vmem:[%s1472 + $0x120] sm:$0xf]
                %1619 = vst [vmem:[%s1473 + $0x420] sm:$0xf] %v1618
                %v1620 = vld [vmem:[%s1472 + $0x124] sm:$0xf]
                %1621 = vst [vmem:[%s1473 + $0x424] sm:$0xf] %v1620
                %v1622 = vld [vmem:[%s1472 + $0x128] sm:$0xf]
                %1623 = vst [vmem:[%s1473 + $0x428] sm:$0xf] %v1622
                %v1624 = vld [vmem:[%s1472 + $0x12c] sm:$0xf]
                %1625 = vst [vmem:[%s1473 + $0x42c] sm:$0xf] %v1624
                %v1626 = vld [vmem:[%s1472 + $0x130] sm:$0xf]
                %1627 = vst [vmem:[%s1473 + $0x430] sm:$0xf] %v1626
                %v1628 = vld [vmem:[%s1472 + $0x134] sm:$0xf]
                %1629 = vst [vmem:[%s1473 + $0x434] sm:$0xf] %v1628
                %v1630 = vld [vmem:[%s1472 + $0x138] sm:$0xf]
                %1631 = vst [vmem:[%s1473 + $0x438] sm:$0xf] %v1630
                %v1632 = vld [vmem:[%s1472 + $0x13c] sm:$0xf]
                %1633 = vst [vmem:[%s1473 + $0x43c] sm:$0xf] %v1632
                %v1634 = vld [vmem:[%s1472 + $0x140] sm:$0xf]
                %1635 = vst [vmem:[%s1473 + $0x440] sm:$0xf] %v1634
                %v1636 = vld [vmem:[%s1472 + $0x144] sm:$0xf]
                %1637 = vst [vmem:[%s1473 + $0x444] sm:$0xf] %v1636
                %v1638 = vld [vmem:[%s1472 + $0x148] sm:$0xf]
                %1639 = vst [vmem:[%s1473 + $0x448] sm:$0xf] %v1638
                %v1640 = vld [vmem:[%s1472 + $0x14c] sm:$0xf]
                %1641 = vst [vmem:[%s1473 + $0x44c] sm:$0xf] %v1640
                %v1642 = vld [vmem:[%s1472 + $0x150] sm:$0xf]
                %1643 = vst [vmem:[%s1473 + $0x450] sm:$0xf] %v1642
                %v1644 = vld [vmem:[%s1472 + $0x154] sm:$0xf]
                %1645 = vst [vmem:[%s1473 + $0x454] sm:$0xf] %v1644
                %v1646 = vld [vmem:[%s1472 + $0x158] sm:$0xf]
                %1647 = vst [vmem:[%s1473 + $0x458] sm:$0xf] %v1646
                %v1648 = vld [vmem:[%s1472 + $0x15c] sm:$0xf]
                %1649 = vst [vmem:[%s1473 + $0x45c] sm:$0xf] %v1648
                %v1650 = vld [vmem:[%s1472 + $0x160] sm:$0xf]
                %1651 = vst [vmem:[%s1473 + $0x460] sm:$0xf] %v1650
                %v1652 = vld [vmem:[%s1472 + $0x164] sm:$0xf]
                %1653 = vst [vmem:[%s1473 + $0x464] sm:$0xf] %v1652
                %v1654 = vld [vmem:[%s1472 + $0x168] sm:$0xf]
                %1655 = vst [vmem:[%s1473 + $0x468] sm:$0xf] %v1654
                %v1656 = vld [vmem:[%s1472 + $0x16c] sm:$0xf]
                %1657 = vst [vmem:[%s1473 + $0x46c] sm:$0xf] %v1656
                %v1658 = vld [vmem:[%s1472 + $0x170] sm:$0xf]
                %1659 = vst [vmem:[%s1473 + $0x470] sm:$0xf] %v1658
                %v1660 = vld [vmem:[%s1472 + $0x174] sm:$0xf]
                %1661 = vst [vmem:[%s1473 + $0x474] sm:$0xf] %v1660
                %v1662 = vld [vmem:[%s1472 + $0x178] sm:$0xf]
                %1663 = vst [vmem:[%s1473 + $0x478] sm:$0xf] %v1662
                %v1664 = vld [vmem:[%s1472 + $0x17c] sm:$0xf]
                %1665 = vst [vmem:[%s1473 + $0x47c] sm:$0xf] %v1664
              $region57: #{tpu_custom_call.1} parent=51 // loop_footer
                %s1471 = sadd.s32 1, %s1467
              $region58: #{tpu_custom_call.1} parent=51 // loop_footer_branch
                %1466 = sbr.rel target = $region54
              $region59: #{tpu_custom_call.1} parent=51 // loop_exit
                _
            $region52: #{tpu_custom_call.1} parent=43 // pred_fallthru
              _
          $region44: #{tpu_custom_call.1} parent=39 // pred_fallthru
            _
          %1877 = vnop
        $region40: #{tpu_custom_call.1} parent=35 // pred_fallthru
          _
      $region36: #{tpu_custom_call.1} parent=5 // pred_fallthru
        _
      %p1878 = scmp.le.s32.totalorder 2, %s10
      // Predicated region
      $region78: #{tpu_custom_call.1} parent=5 // pred_check
        %p1879 = pneg %p1878
      $region79: #{tpu_custom_call.1} parent=5 // pred_check_branch
        %1881 = sbr.rel (%p1879) target = $region81
      $region80: #{tpu_custom_call.1} parent=5 // pred_region
        %s1882 = ssub.s32 %s10, 2
        // Predicated region
        $region82: #{tpu_custom_call.1} parent=80 // pred_check
          %p1883 = pneg %p144
        $region83: #{tpu_custom_call.1} parent=80 // pred_check_branch
          %1885 = sbr.rel (%p1883) target = $region85
        $region84: #{tpu_custom_call.1} parent=80 // pred_region
          %s1886 = sand.u32 %s129, 1
          %s1887 = sand.u32 %s129, 1
          %s1888 = smul.addr %s1887, 384
          %s1889 = scalar_lea.vmem [#allocation2], %s1888
        $region85: #{tpu_custom_call.1} parent=80 // pred_fallthru
          _
      $region81: #{tpu_custom_call.1} parent=5 // pred_fallthru
        _
    $region6: #{tpu_custom_call.1} parent=1 // loop_footer
      %s14 = sadd.s32 1, %s10
    $region7: #{tpu_custom_call.1} parent=1 // loop_footer_branch
      %9 = sbr.rel target = $region3
    $region8: #{tpu_custom_call.1} parent=1 // loop_exit
      _

</llo_original>
